<compile_context>
chip_gen: v7x
topology: tpu7x:2x2x1
jax: 0.10.0
libtpu: 0.0.40
codegen_flags: <defaults>
</compile_context>

<pallas_src>
import jax
import jax.numpy as jnp
from jax.experimental import pallas as pl
from jax.experimental.pallas import tpu as pltpu


# ---------------------------------------------------------------------------
# Kernel A: logits[vocab tile j] = flat_context_embedding @ W[:, tile j] + bias[tile j]
# ---------------------------------------------------------------------------
def _logits_kernel(x_ref, w_ref, b_ref, out_ref):
    # x_ref : (1, K)  f32 flattened context embedding (K = C*D), resident across tiles
    # w_ref : (K, TN) bf16 weight tile  -- the HBM-bandwidth-dominating stream
    # b_ref : (1, TN) f32 bias tile
    # out_ref: (1, TN) f32 logits tile
    lhs = x_ref[...].astype(jnp.bfloat16)                     # tiny; MXU takes bf16
    out_ref[...] = jnp.dot(lhs, w_ref[...],
                           preferred_element_type=jnp.float32) + b_ref[...]


# ---------------------------------------------------------------------------
# Kernel B: tiled, numerically stable log_softmax over a (1, V) row.
# grid = (2, num_tiles): phase 0 does an online max / sum-exp sweep into VMEM scratch,
# phase 1 re-reads each tile and writes x - logsumexp.
# ---------------------------------------------------------------------------
def _log_softmax_kernel(x_ref, o_ref, m_scr, s_scr):
    phase = pl.program_id(0)
    j = pl.program_id(1)

    @pl.when(jnp.logical_and(phase == 0, j == 0))
    def _():
        m_scr[...] = jnp.full_like(m_scr, -jnp.inf)
        s_scr[...] = jnp.zeros_like(s_scr)

    @pl.when(phase == 0)
    def _():
        x = x_ref[...]
        m_old = m_scr[...]
        m_new = jnp.maximum(m_old, jnp.max(x, axis=-1, keepdims=True))
        s_scr[...] = (s_scr[...] * jnp.exp(m_old - m_new)
                      + jnp.sum(jnp.exp(x - m_new), axis=-1, keepdims=True))
        m_scr[...] = m_new

    @pl.when(phase == 1)
    def _():
        o_ref[...] = x_ref[...] - (m_scr[...] + jnp.log(s_scr[...]))


# ---------------------------------------------------------------------------
# Tiling helpers
# ---------------------------------------------------------------------------
def _divisor_tile(vocab_size, max_tile):
    """Largest multiple of 128 that divides vocab_size and is <= max_tile."""
    tn = min(vocab_size, max(128, (max_tile // 128) * 128))
    while vocab_size % tn != 0:
        tn -= 128
    return tn


def _pick_tiling(vocab_size, k_dim):
    """Generation-aware vocab tile for the bf16 weight stream.

    Returns (vocab_tile, vmem_limit_bytes).  The double-buffered bf16 weight tile
    (2 * K * TN * 2 bytes) is capped at ~1/4 of per-core VMEM:
      v5e/v6e (128 MiB): ~32 MiB  -> TN ~ 16k for K = 512
      v7x     (64 MiB) : ~16 MiB  -> TN ~  8k for K = 512
    """
    try:
        vmem_capacity = int(pltpu.get_tpu_info().vmem_capacity_bytes)
    except Exception:                      # conservative (v7x-safe) fallback
        vmem_capacity = 64 * 1024 * 1024
    w_budget = vmem_capacity // 4          # double-buffered weight-tile budget
    vmem_limit = (vmem_capacity * 5) // 8  # 80 MiB on 128-MiB chips, 40 MiB on v7x

    tn = w_budget // (2 * k_dim * 2)       # bf16, x2 for double buffering
    tn = _divisor_tile(vocab_size, tn)

    # Give the single "parallel" vocab axis at least two tiles so a 2-TensorCore chip
    # (v7x) can shard it across both cores; cost on 1-TC chips is one extra grid step.
    if vocab_size // tn < 2 and vocab_size % 256 == 0:
        tn = vocab_size // 2
    return tn, vmem_limit


# ---------------------------------------------------------------------------
# One-time weight preparation (hoisted OUT of the per-call forward path)
# ---------------------------------------------------------------------------
def prepare_cbow_linear_weight(w_pt):
    """Convert the PyTorch nn.Linear weight (V, C*D) to the streamed layout:
    transposed to (C*D, V) and cast to bf16.  Do this once at init / checkpoint-load
    time: the W stream dominates this kernel, so it must not be re-cast from f32 on
    every forward call."""
    return jnp.asarray(w_pt).T.astype(jnp.bfloat16)


# ---------------------------------------------------------------------------
# Forward pass
# ---------------------------------------------------------------------------
def cbow_forward(indices, emb_table, w_t_bf16, bias, *, vocab_tile=None):
    """CBOW forward pass (matches the PyTorch module's forward).

    indices   : (C,)      int context-word ids
    emb_table : (V, D)    f32 embedding table
    w_t_bf16  : (C*D, V)  bf16 linear weight, pre-transposed & pre-cast
                          (see prepare_cbow_linear_weight)
    bias      : (V,)      f32 linear bias
    returns   : (1, V)    f32 log-probabilities
    """
    context_size = indices.shape[0]
    vocab_size, embed_dim = emb_table.shape
    k_dim = context_size * embed_dim
    assert w_t_bf16.shape == (k_dim, vocab_size)
    assert w_t_bf16.dtype == jnp.bfloat16, (
        "pre-cast W once with prepare_cbow_linear_weight (not per call)")
    assert bias.shape == (vocab_size,)
    # TODO(synk): mask ragged vocab tiles / padded lanes when V is not a multiple of 128.
    assert vocab_size % 128 == 0

    auto_tile, vmem_limit = _pick_tiling(vocab_size, k_dim)
    if vocab_tile is None:
        vocab_tile = auto_tile
    assert vocab_tile % 128 == 0 and vocab_size % vocab_tile == 0
    num_tiles = vocab_size // vocab_tile

    # Embedding lookup + flatten ("embeds.view(1, -1)"): a ~K-element XLA gather.
    indices = indices.astype(jnp.int32)
    x = emb_table[indices].reshape(1, k_dim)                  # (1, C*D) f32
    b2 = bias.astype(jnp.float32).reshape(1, vocab_size)

    cost = pl.CostEstimate(
        flops=2 * k_dim * vocab_size,
        transcendentals=0,
        bytes_accessed=2 * k_dim * vocab_size + 8 * vocab_size + 4 * k_dim)

    logits = pl.pallas_call(
        _logits_kernel,
        out_shape=jax.ShapeDtypeStruct((1, vocab_size), jnp.float32),
        grid=(num_tiles,),
        in_specs=[
            pl.BlockSpec((1, k_dim), lambda j: (0, 0)),            # flat context emb
            pl.BlockSpec((k_dim, vocab_tile), lambda j: (0, j)),   # bf16 weight tile
            pl.BlockSpec((1, vocab_tile), lambda j: (0, j)),       # bias tile
        ],
        out_specs=pl.BlockSpec((1, vocab_tile), lambda j: (0, j)),
        compiler_params=pltpu.CompilerParams(
            dimension_semantics=("parallel",),        # vocab tiles across TensorCores
            vmem_limit_bytes=vmem_limit,
        ),
        cost_estimate=cost,
    )(x, w_t_bf16, b2)

    # Full-V log_softmax: tiny tiled two-phase second pass (<1% of the W-stream bytes).
    sm_tile = _divisor_tile(vocab_size, 2048)
    sm_tiles = vocab_size // sm_tile
    logp = pl.pallas_call(
        _log_softmax_kernel,
        out_shape=jax.ShapeDtypeStruct((1, vocab_size), jnp.float32),
        grid=(2, sm_tiles),
        in_specs=[pl.BlockSpec((1, sm_tile), lambda p, j: (0, j))],
        out_specs=pl.BlockSpec((1, sm_tile), lambda p, j: (0, j)),
        scratch_shapes=[pltpu.VMEM((1, 1), jnp.float32),   # running max
                        pltpu.VMEM((1, 1), jnp.float32)],  # running sum-exp
        compiler_params=pltpu.CompilerParams(
            dimension_semantics=("arbitrary", "arbitrary"),
            vmem_limit_bytes=vmem_limit,
        ),
    )(logits)
    return logp


if __name__ == "__main__":
    # Small, TPU-friendly shapes consistent with CBOW(vocab_size, embed_dim, context_size).
    vocab_size = 1024
    embed_dim = 128
    context_size = 4

    key = jax.random.PRNGKey(0)
    k_emb, k_w, k_b, k_idx = jax.random.split(key, 4)

    # nn.Embedding init: N(0, 1)
    emb_table = jax.random.normal(k_emb, (vocab_size, embed_dim), dtype=jnp.float32)

    # nn.Linear(C*D, V) init: U(-k, k), k = 1/sqrt(fan_in); PyTorch layout (out, in)
    fan_in = context_size * embed_dim
    bound = float(1.0 / (fan_in ** 0.5))
    w_pt = jax.random.uniform(k_w, (vocab_size, fan_in),
                              minval=-bound, maxval=bound, dtype=jnp.float32)
    b_pt = jax.random.uniform(k_b, (vocab_size,),
                              minval=-bound, maxval=bound, dtype=jnp.float32)

    # Context word indices (the module's `inputs`)
    indices = jax.random.randint(k_idx, (context_size,), 0, vocab_size, dtype=jnp.int32)

    # One-time weight preparation (bf16 + transpose), hoisted out of the forward path.
    w_stream = prepare_cbow_linear_weight(w_pt)        # (C*D, V) bf16

    fwd = jax.jit(cbow_forward)                        # auto (generation-aware) tiling
    log_probs = jax.block_until_ready(fwd(indices, emb_table, w_stream, b_pt))

    # Pure-JAX reference of the PyTorch forward, with the same bf16 rounding of the
    # streamed operands (embedding rows + weight) and f32 math everywhere else.
    emb_bf = emb_table.astype(jnp.bfloat16).astype(jnp.float32)
    w_bf = w_pt.T.astype(jnp.bfloat16).astype(jnp.float32)
    x_flat = emb_bf[indices].reshape(1, -1)            # embeds.view(1, -1)
    logits_ref = x_flat @ w_bf + b_pt[None, :]         # linear1
    ref = jax.nn.log_softmax(logits_ref, axis=1)       # F.log_softmax(dim=1)

    assert log_probs.shape == (1, vocab_size)
    max_err = float(jnp.max(jnp.abs(log_probs - ref)))
    assert jnp.allclose(log_probs, ref, atol=1e-4, rtol=1e-4), max_err

    print("KERNEL_OK")
</pallas_src>

<mosaic_0001>
module attributes {stable_mosaic.version = 11 : i64} {
  func.func @_logits_kernel(%arg0: i32, %arg1: memref<1x512xf32, #tpu.memory_space<vmem>>, %arg2: memref<512x512xbf16, #tpu.memory_space<vmem>>, %arg3: memref<1x512xf32, #tpu.memory_space<vmem>>, %arg4: memref<1x512xf32, #tpu.memory_space<vmem>>) attributes {dimension_semantics = [#tpu.dimension_semantics<parallel>], iteration_bounds = array<i64: 2>, scalar_prefetch = 0 : i64, scratch_operands = 0 : i64, tpu.core_type = #tpu.core_type<tc>, window_params = [{pipeline_mode = #tpu.pipeline_mode<synchronous>, transform_indices = @transform_0, window_bounds = array<i64: 1, 512>}, {transform_indices = @transform_1, window_bounds = array<i64: 512, 512>}, {transform_indices = @transform_2, window_bounds = array<i64: 1, 512>}, {transform_indices = @transform_3, window_bounds = array<i64: 1, 512>}]} {
    %c0 = arith.constant 0 : index
    %c0_0 = arith.constant 0 : index
    %0 = vector.load %arg1[%c0, %c0_0] : memref<1x512xf32, #tpu.memory_space<vmem>>, vector<1x512xf32>
    %1 = arith.truncf %0 : vector<1x512xf32> to vector<1x512xbf16>
    %c0_1 = arith.constant 0 : index
    %c0_2 = arith.constant 0 : index
    %2 = vector.load %arg2[%c0_1, %c0_2] : memref<512x512xbf16, #tpu.memory_space<vmem>>, vector<512x512xbf16>
    %cst = arith.constant dense<0.000000e+00> : vector<1x512xf32>
    %3 = tpu.matmul %1, %2, %cst {dimension_numbers = #tpu.dot_dimension_numbers<[1], [0], [0], [1], [0, 0, 1, 1], [], []>} : vector<1x512xbf16>, vector<512x512xbf16>, vector<1x512xf32> -> vector<1x512xf32>
    %c0_3 = arith.constant 0 : index
    %c0_4 = arith.constant 0 : index
    %4 = vector.load %arg3[%c0_3, %c0_4] : memref<1x512xf32, #tpu.memory_space<vmem>>, vector<1x512xf32>
    %5 = arith.addf %3, %4 : vector<1x512xf32>
    %c0_5 = arith.constant 0 : index
    %c0_6 = arith.constant 0 : index
    %6 = vector.load %arg4[%c0_5, %c0_6] : memref<1x512xf32, #tpu.memory_space<vmem>>, vector<1x512xf32>
    tpu.vector_store %arg4[%c0_5, %c0_6], %5 {strides = array<i32>} : memref<1x512xf32, #tpu.memory_space<vmem>>, vector<1x512xf32>,
    return
  }
  func.func @transform_0(%arg0: i32) -> (i32, i32) {
    %c0_i32 = arith.constant 0 : i32
    %c0_i32_0 = arith.constant 0 : i32
    %c0_i32_1 = arith.constant 0 : i32
    return %c0_i32, %c0_i32_0 : i32, i32
  }
  func.func @transform_1(%arg0: i32) -> (i32, i32) {
    %c0_i32 = arith.constant 0 : i32
    %c0_i32_0 = arith.constant 0 : i32
    return %c0_i32, %arg0 : i32, i32
  }
  func.func @transform_2(%arg0: i32) -> (i32, i32) {
    %c0_i32 = arith.constant 0 : i32
    %c0_i32_0 = arith.constant 0 : i32
    return %c0_i32, %arg0 : i32, i32
  }
  func.func @transform_3(%arg0: i32) -> (i32, i32) {
    %c0_i32 = arith.constant 0 : i32
    %c0_i32_0 = arith.constant 0 : i32
    return %c0_i32, %arg0 : i32, i32
  }
}

module attributes {stable_mosaic.version = 11 : i64} {
  func.func @_log_softmax_kernel(%arg0: i32, %arg1: i32, %arg2: memref<1x1024xf32, #tpu.memory_space<vmem>>, %arg3: memref<1x1024xf32, #tpu.memory_space<vmem>>, %arg4: memref<1x1xf32, #tpu.memory_space<vmem>>, %arg5: memref<1x1xf32, #tpu.memory_space<vmem>>) attributes {dimension_semantics = [#tpu.dimension_semantics<arbitrary>, #tpu.dimension_semantics<arbitrary>], iteration_bounds = array<i64: 2, 1>, scalar_prefetch = 0 : i64, scratch_operands = 2 : i64, tpu.core_type = #tpu.core_type<tc>, window_params = [{transform_indices = @transform_0, window_bounds = array<i64: 1, 1024>}, {transform_indices = @transform_1, window_bounds = array<i64: 1, 1024>}]} {
    %c0_i32 = arith.constant 0 : i32
    %0 = arith.cmpi eq, %arg0, %c0_i32 : i32
    %c0_i32_0 = arith.constant 0 : i32
    %1 = arith.cmpi eq, %arg1, %c0_i32_0 : i32
    %2 = arith.andi %0, %1 : i1
    %3 = arith.extui %2 : i1 to i32
    %c0_i32_1 = arith.constant 0 : i32
    %4 = arith.cmpi ne, %3, %c0_i32_1 : i32
    scf.if %4 {
      %cst = arith.constant 0xFF800000 : f32
      %11 = vector.broadcast %cst : f32 to vector<1x1xf32>
      %c0 = arith.constant 0 : index
      %c0_5 = arith.constant 0 : index
      %12 = vector.load %arg4[%c0, %c0_5] : memref<1x1xf32, #tpu.memory_space<vmem>>, vector<1x1xf32>
      tpu.vector_store %arg4[%c0, %c0_5], %11 {strides = array<i32>} : memref<1x1xf32, #tpu.memory_space<vmem>>, vector<1x1xf32>,
      %cst_6 = arith.constant 0.000000e+00 : f32
      %13 = vector.broadcast %cst_6 : f32 to vector<1x1xf32>
      %c0_7 = arith.constant 0 : index
      %c0_8 = arith.constant 0 : index
      %14 = vector.load %arg5[%c0_7, %c0_8] : memref<1x1xf32, #tpu.memory_space<vmem>>, vector<1x1xf32>
      tpu.vector_store %arg5[%c0_7, %c0_8], %13 {strides = array<i32>} : memref<1x1xf32, #tpu.memory_space<vmem>>, vector<1x1xf32>,
    } else {
    }
    %c0_i32_2 = arith.constant 0 : i32
    %5 = arith.cmpi eq, %arg0, %c0_i32_2 : i32
    %6 = arith.extui %5 : i1 to i32
    %c0_i32_3 = arith.constant 0 : i32
    %7 = arith.cmpi ne, %6, %c0_i32_3 : i32
    scf.if %7 {
      %c0 = arith.constant 0 : index
      %c0_5 = arith.constant 0 : index
      %11 = vector.load %arg2[%c0, %c0_5] : memref<1x1024xf32, #tpu.memory_space<vmem>>, vector<1x1024xf32>
      %c0_6 = arith.constant 0 : index
      %c0_7 = arith.constant 0 : index
      %12 = vector.load %arg4[%c0_6, %c0_7] : memref<1x1xf32, #tpu.memory_space<vmem>>, vector<1x1xf32>
      %cst = arith.constant dense<0xFF800000> : vector<1xf32>
      %13 = vector.multi_reduction <maximumf>, %11, %cst [1] : vector<1x1024xf32> to vector<1xf32>
      %14 = vector.shape_cast %13 : vector<1xf32> to vector<1x1xf32>
      %15 = arith.maximumf %12, %14 : vector<1x1xf32>
      %c0_8 = arith.constant 0 : index
      %c0_9 = arith.constant 0 : index
      %16 = vector.load %arg5[%c0_8, %c0_9] : memref<1x1xf32, #tpu.memory_space<vmem>>, vector<1x1xf32>
      %17 = arith.subf %12, %15 : vector<1x1xf32>
      %18 = math.exp %17 : vector<1x1xf32>
      %19 = arith.mulf %16, %18 : vector<1x1xf32>
      %20 = vector.broadcast %15 : vector<1x1xf32> to vector<1x1024xf32>
      %21 = arith.subf %11, %20 : vector<1x1024xf32>
      %22 = math.exp %21 : vector<1x1024xf32>
      %cst_10 = arith.constant dense<0.000000e+00> : vector<1xf32>
      %23 = vector.multi_reduction <add>, %22, %cst_10 [1] : vector<1x1024xf32> to vector<1xf32>
      %24 = vector.shape_cast %23 : vector<1xf32> to vector<1x1xf32>
      %25 = arith.addf %19, %24 : vector<1x1xf32>
      %c0_11 = arith.constant 0 : index
      %c0_12 = arith.constant 0 : index
      %26 = vector.load %arg5[%c0_11, %c0_12] : memref<1x1xf32, #tpu.memory_space<vmem>>, vector<1x1xf32>
      tpu.vector_store %arg5[%c0_11, %c0_12], %25 {strides = array<i32>} : memref<1x1xf32, #tpu.memory_space<vmem>>, vector<1x1xf32>,
      %c0_13 = arith.constant 0 : index
      %c0_14 = arith.constant 0 : index
      %27 = vector.load %arg4[%c0_13, %c0_14] : memref<1x1xf32, #tpu.memory_space<vmem>>, vector<1x1xf32>
      tpu.vector_store %arg4[%c0_13, %c0_14], %15 {strides = array<i32>} : memref<1x1xf32, #tpu.memory_space<vmem>>, vector<1x1xf32>,
    } else {
    }
    %c1_i32 = arith.constant 1 : i32
    %8 = arith.cmpi eq, %arg0, %c1_i32 : i32
    %9 = arith.extui %8 : i1 to i32
    %c0_i32_4 = arith.constant 0 : i32
    %10 = arith.cmpi ne, %9, %c0_i32_4 : i32
    scf.if %10 {
      %c0 = arith.constant 0 : index
      %c0_5 = arith.constant 0 : index
      %11 = vector.load %arg2[%c0, %c0_5] : memref<1x1024xf32, #tpu.memory_space<vmem>>, vector<1x1024xf32>
      %c0_6 = arith.constant 0 : index
      %c0_7 = arith.constant 0 : index
      %12 = vector.load %arg4[%c0_6, %c0_7] : memref<1x1xf32, #tpu.memory_space<vmem>>, vector<1x1xf32>
      %c0_8 = arith.constant 0 : index
      %c0_9 = arith.constant 0 : index
      %13 = vector.load %arg5[%c0_8, %c0_9] : memref<1x1xf32, #tpu.memory_space<vmem>>, vector<1x1xf32>
      %14 = math.log %13 : vector<1x1xf32>
      %15 = arith.addf %12, %14 : vector<1x1xf32>
      %16 = vector.broadcast %15 : vector<1x1xf32> to vector<1x1024xf32>
      %17 = arith.subf %11, %16 : vector<1x1024xf32>
      %c0_10 = arith.constant 0 : index
      %c0_11 = arith.constant 0 : index
      %18 = vector.load %arg3[%c0_10, %c0_11] : memref<1x1024xf32, #tpu.memory_space<vmem>>, vector<1x1024xf32>
      tpu.vector_store %arg3[%c0_10, %c0_11], %17 {strides = array<i32>} : memref<1x1024xf32, #tpu.memory_space<vmem>>, vector<1x1024xf32>,
    } else {
    }
    return
  }
  func.func @transform_0(%arg0: i32, %arg1: i32) -> (i32, i32) {
    %c0_i32 = arith.constant 0 : i32
    %c0_i32_0 = arith.constant 0 : i32
    return %c0_i32, %arg1 : i32, i32
  }
  func.func @transform_1(%arg0: i32, %arg1: i32) -> (i32, i32) {
    %c0_i32 = arith.constant 0 : i32
    %c0_i32_0 = arith.constant 0 : i32
    return %c0_i32, %arg1 : i32, i32
  }
}

</mosaic_0001>

<llo_original>
// kernel: cbow_forward.3
$region0: #{cbow_forward.3}
  #allocation0 [shape = 'u32[]', space=smem, size = 0x4, offset = 0x4, fixed_abs, tag = 'smem constant byte address 0x4 - core index']
  #allocation1 [shape = 'u32[144,128]{1,0:T(1,128)}', space=vmem, size = 0x12000, scoped, tag = 'internal scratch']
  #allocation2 [shape = 'f32[1,1]{1,0:T(1,128)}', space=vmem, size = 0x200, scoped, tag = 'scratch operand']
  #allocation3 [shape = 'f32[1,1]{1,0:T(1,128)}', space=vmem, size = 0x200, scoped, tag = 'scratch operand']
  %s0 = inlined_call_operand.vmem [shape: f32[1,1024], index: 0, kind: input, shape index: {}]
  %s1 = inlined_call_operand.hbm [shape: f32[1,1024], index: 1, kind: output, shape index: {}]
  %s2 = sld [smem:[#allocation0]]
  $region49: #{cbow_forward.3} parent=0
    _
  %s4 = ssub.s32 1, %s2
  %s5 = scalar_select 0, %s4, %s2
  $region1: #{cbow_forward.3} parent=0
    #allocation4 [shape = 'u8[4096]{0}', space=vmem, size = 0x1000, scoped, tag = 'output window, operand 0, single buffered']
    #allocation5 [shape = 's32[2]{0}', space=sflag, size = 0x8, scoped, tag = 'scoped memory for cbow_forward.3']
    %6 = vsyncpa [#allocation5], 0
    loop: start=0, step=1, limit=4
    $region2: #{cbow_forward.3} parent=1 // loop_pre_header
      _
    $region3: #{cbow_forward.3} parent=1 // loop_header
      %s8 = sphi 0, %s12
      %p9 = scmp.ge.s32.totalorder %s8, 4
      %s15 = sphi 0, %s27
      %s16 = sphi 0, %s23
      %s17 = sphi 0, %s15
      %s18 = sphi 0, %s16
      %s19 = sphi 0, %s17
      %s20 = sphi 0, %s18
      %s30 = sphi 0, %s32
      %s33 = sphi 0, %s30
      %s34 = sphi 0, %s33
      %s50 = sphi 0, %s34
      %s56 = sphi 0, %s58
      %s59 = sphi 0, %s56
      %s60 = sphi 0, %s59
      %s76 = sphi 0, %s60
    $region4: #{cbow_forward.3} parent=1 // loop_header_branch
      %11 = sbr.rel (%p9) target = $region8
    $region5: #{cbow_forward.3} parent=1 // loop_body
      %s13 = ssub.s32 %s8, 1
      %s14 = ssub.s32 %s8, 2
      %s21 = sadd.s32 1, %s16
      %p22 = scmp.ge.s32.totalorder %s21, 1
      %s23 = scalar_select %p22, 0, %s21
      %s24 = sadd.s32 1, %s15
      %s25 = scalar_select %p22, %s24, %s15
      %p26 = scmp.ge.s32.totalorder %s25, 2
      %s27 = scalar_select %p26, 0, %s25
      %s28 = ssub.s32 %s16, %s23
      %p29 = scmp.eq.s32.totalorder %s28, 0
      %s31 = sadd.s32 %s30, 1
      %s32 = scalar_select %p29, %s30, %s31
      %p35 = pneg %p29
      %p36 = scmp.eq.s32.totalorder %s8, 1
      %p37 = por %p35, %p36
      %p38 = scmp.ne.s32.totalorder %s30, %s33
      %p39 = scmp.eq.s32.totalorder %s8, 0
      %p40 = por %p38, %p39
      %p41 = scmp.ne.s32.totalorder %s30, %s33
      %p42 = scmp.eq.s32.totalorder %s13, 1
      %p43 = por %p41, %p42
      %p44 = scmp.ne.s32.totalorder %s33, %s34
      %p45 = scmp.eq.s32.totalorder %s13, 0
      %p46 = por %p44, %p45
      %p47 = scmp.ne.s32.totalorder %s33, %s34
      %p48 = scmp.eq.s32.totalorder %s14, 1
      %p49 = por %p47, %p48
      %p51 = scmp.ne.s32.totalorder %s34, %s50
      %p52 = scmp.eq.s32.totalorder %s14, 0
      %p53 = por %p51, %p52
      %s54 = ssub.s32 %s16, %s23
      %p55 = scmp.eq.s32.totalorder %s54, 0
      %s57 = sadd.s32 %s56, 1
      %s58 = scalar_select %p55, %s56, %s57
      %p61 = pneg %p55
      %p62 = scmp.eq.s32.totalorder %s8, 1
      %p63 = por %p61, %p62
      %p64 = scmp.ne.s32.totalorder %s56, %s59
      %p65 = scmp.eq.s32.totalorder %s8, 0
      %p66 = por %p64, %p65
      %p67 = scmp.ne.s32.totalorder %s56, %s59
      %p68 = scmp.eq.s32.totalorder %s13, 1
      %p69 = por %p67, %p68
      %p70 = scmp.ne.s32.totalorder %s59, %s60
      %p71 = scmp.eq.s32.totalorder %s13, 0
      %p72 = por %p70, %p71
      %p73 = scmp.ne.s32.totalorder %s59, %s60
      %p74 = scmp.eq.s32.totalorder %s14, 1
      %p75 = por %p73, %p74
      %p77 = scmp.ne.s32.totalorder %s60, %s76
      %p78 = scmp.eq.s32.totalorder %s14, 0
      %p79 = por %p77, %p78
      %p80 = scmp.le.s32.totalorder 1, %s8
      %p81 = scmp.lt.s32.totalorder %s8, 3
      %p82 = pnand %p80, %p81
      %p83 = pneg %p82
      // Predicated region
      $region9: #{cbow_forward.3} parent=5 // pred_check
        _
      $region10: #{cbow_forward.3} parent=5 // pred_check_branch
        %85 = sbr.rel (%p82) target = $region12
      $region11: #{cbow_forward.3} parent=5 // pred_region
        %s86 = ssub.s32 %s8, 1
        // Predicated region
        $region13: #{cbow_forward.3} parent=11 // pred_check
          %p87 = pneg %p46
        $region14: #{cbow_forward.3} parent=11 // pred_check_branch
          %89 = sbr.rel (%p87) target = $region16
        $region15: #{cbow_forward.3} parent=11 // pred_region
          %s90 = smul.u32 8, %s18
          %p91 = scmp.lt.s32.totalorder %s90, 7
          %s92 = scalar_select %p91, %s90, 7
          %s93 = scalar_lea.vmem %s0, %s92
          %s94 = smul.u32 8, %s18
        $region16: #{cbow_forward.3} parent=11 // pred_fallthru
          _
      $region12: #{cbow_forward.3} parent=5 // pred_fallthru
        _
      %p95 = scmp.lt.s32.totalorder %s8, 2
      // Predicated region
      $region17: #{cbow_forward.3} parent=5 // pred_check
        %p96 = pneg %p95
      $region18: #{cbow_forward.3} parent=5 // pred_check_branch
        %98 = sbr.rel (%p96) target = $region20
      $region19: #{cbow_forward.3} parent=5 // pred_region
        _
      $region20: #{cbow_forward.3} parent=5 // pred_fallthru
        _
      %p99 = scmp.le.s32.totalorder 1, %s8
      %p100 = scmp.lt.s32.totalorder %s8, 3
      %p101 = pnand %p99, %p100
      %p102 = pneg %p101
      // Predicated region
      $region21: #{cbow_forward.3} parent=5 // pred_check
        _
      $region22: #{cbow_forward.3} parent=5 // pred_check_branch
        %104 = sbr.rel (%p101) target = $region24
      $region23: #{cbow_forward.3} parent=5 // pred_region
        %s105 = ssub.s32 %s8, 1
        %s106 = smul.u32 8, %s18
        %p107 = scmp.lt.s32.totalorder %s106, 7
        %s108 = scalar_select %p107, %s106, 7
        %s109 = scalar_lea.vmem %s0, %s108
        %p110 = pneg %p46
        %p111 = pneg %p43
        %p112 = pneg %p72
        %p113 = pneg %p69
        %s114 = smul.u32 8, %s18
        %p115 = scmp.lt.s32.totalorder %s114, 7
        %s116 = scalar_select %p115, %s114, 7
        %s117 = scalar_lea.vmem %s0, %s116
        %s118 = smul.u32 8, %s18
        %s119 = smul.u32 8, %s18
        %p120 = scmp.eq.s32.totalorder %s17, 0
        %p121 = scmp.eq.s32.totalorder %s18, 0
        %p122 = pnand %p120, %p121
        %p123 = pneg %p122
        // Predicated region
        $region25: #{cbow_forward.3} parent=23 // pred_check
          _
        $region26: #{cbow_forward.3} parent=23 // pred_check_branch
          %125 = sbr.rel (%p122) target = $region28
        $region27: #{cbow_forward.3} parent=23 // pred_region
          %vm126 = vcmask 0
          %127 = vst.msk [vmem:[#allocation2] sm:$0x1] %vm126, -inf
          %128 = vst.msk [vmem:[#allocation3] sm:$0x1] %vm126, 0.0
        $region28: #{cbow_forward.3} parent=23 // pred_fallthru
          _
        // Predicated region
        $region29: #{cbow_forward.3} parent=23 // pred_check
          %p129 = pneg %p120
        $region30: #{cbow_forward.3} parent=23 // pred_check_branch
          %131 = sbr.rel (%p129) target = $region32
        $region31: #{cbow_forward.3} parent=23 // pred_region
          %v132 = vld [vmem:[%s117] sm:$0xff]
          %v133 = vld [vmem:[#allocation2] sm:$0x1]
          %v135 = vlaneseq
          %v136 = vshrl.u32 %v135, 7
          %v137 = vsub.s32 0, %v136
          %v138 = vrot.slane %v132, %v137
          %v139 = vlaneseq
          %v140 = vshrl.u32 %v139, 7
          %v141 = vsub.s32 1, %v140
          %v142 = vrot.slane %v132, %v141
          %v143 = vlaneseq
          %v144 = vshrl.u32 %v143, 7
          %v145 = vsub.s32 2, %v144
          %v146 = vrot.slane %v132, %v145
          %v147 = vlaneseq
          %v148 = vshrl.u32 %v147, 7
          %v149 = vsub.s32 3, %v148
          %v150 = vrot.slane %v132, %v149
          %v151 = vlaneseq
          %v152 = vshrl.u32 %v151, 7
          %v153 = vsub.s32 4, %v152
          %v154 = vrot.slane %v132, %v153
          %v155 = vlaneseq
          %v156 = vshrl.u32 %v155, 7
          %v157 = vsub.s32 5, %v156
          %v158 = vrot.slane %v132, %v157
          %v159 = vlaneseq
          %v160 = vshrl.u32 %v159, 7
          %v161 = vsub.s32 6, %v160
          %v162 = vrot.slane %v132, %v161
          %v163 = vlaneseq
          %v164 = vshrl.u32 %v163, 7
          %v165 = vsub.s32 7, %v164
          %v166 = vrot.slane %v132, %v165
          %vm175 = vcmask 1040384
          %v176 = vsel %vm175, %v138, -inf
          %v177 = vsel %vm175, %v142, -inf
          %v178 = vsel %vm175, %v146, -inf
          %v179 = vsel %vm175, %v150, -inf
          %v180 = vsel %vm175, %v154, -inf
          %v181 = vmax.f32 %v176, %v180
          %v182 = vsel %vm175, %v158, -inf
          %v183 = vmax.f32 %v177, %v182
          %v184 = vsel %vm175, %v162, -inf
          %v185 = vmax.f32 %v178, %v184
          %v186 = vsel %vm175, %v166, -inf
          %v187 = vmax.f32 %v179, %v186
          %v188 = vmax.f32 %v181, %v183
          %v189 = vmax.f32 %v185, %v187
          %v190 = vmax.f32 %v188, %v189
          %191 = vmax.xlane.f32.xlu0 %v190
          %v192 = vpop.xlane.xlu0 %191
          %v193 = vmax.f32 %v133, %v192
          %v194 = vld [vmem:[#allocation3] sm:$0x1]
          %v195 = vsub.f32 %v133, %v193
          %v196 = vmul.f32 %v195, 1.442695
          %v197 = vpow.pop %v196
          %v198 = vmul.f32 %v194, %v197
          %200 = vset.pattern.permute.xlu0 0
          %201 = vperm.xlu0 %200, %v193
          %v202 = vpop.permute.xlu0 %201
          %v204 = vlaneseq
          %v205 = vshrl.u32 %v204, 7
          %v206 = vsub.s32 0, %v205
          %v207 = vrot.slane %v202, %v206
          %v208 = vsub.f32 %v132, %v207
          %v209 = vmul.f32 %v208, 1.442695
          %v210 = vpow.pop %v209
          %v212 = vlaneseq
          %v213 = vshrl.u32 %v212, 7
          %v214 = vsub.s32 0, %v213
          %v215 = vrot.slane %v210, %v214
          %v216 = vlaneseq
          %v217 = vshrl.u32 %v216, 7
          %v218 = vsub.s32 1, %v217
          %v219 = vrot.slane %v210, %v218
          %v220 = vlaneseq
          %v221 = vshrl.u32 %v220, 7
          %v222 = vsub.s32 2, %v221
          %v223 = vrot.slane %v210, %v222
          %v224 = vlaneseq
          %v225 = vshrl.u32 %v224, 7
          %v226 = vsub.s32 3, %v225
          %v227 = vrot.slane %v210, %v226
          %v228 = vlaneseq
          %v229 = vshrl.u32 %v228, 7
          %v230 = vsub.s32 4, %v229
          %v231 = vrot.slane %v210, %v230
          %v232 = vlaneseq
          %v233 = vshrl.u32 %v232, 7
          %v234 = vsub.s32 5, %v233
          %v235 = vrot.slane %v210, %v234
          %v236 = vlaneseq
          %v237 = vshrl.u32 %v236, 7
          %v238 = vsub.s32 6, %v237
          %v239 = vrot.slane %v210, %v238
          %v240 = vlaneseq
          %v241 = vshrl.u32 %v240, 7
          %v242 = vsub.s32 7, %v241
          %v243 = vrot.slane %v210, %v242
          %v252 = vsel %vm175, %v215, 0.0
          %v253 = vsel %vm175, %v219, 0.0
          %v254 = vadd.f32 %v252, %v253
          %v255 = vsel %vm175, %v223, 0.0
          %v256 = vadd.f32 %v254, %v255
          %v257 = vsel %vm175, %v227, 0.0
          %v258 = vadd.f32 %v256, %v257
          %v259 = vsel %vm175, %v231, 0.0
          %v260 = vadd.f32 %v258, %v259
          %v261 = vsel %vm175, %v235, 0.0
          %v262 = vadd.f32 %v260, %v261
          %v263 = vsel %vm175, %v239, 0.0
          %v264 = vadd.f32 %v262, %v263
          %v265 = vsel %vm175, %v243, 0.0
          %v266 = vadd.f32 %v264, %v265
          %267 = vadd.xlane.f32.xlu0 %v266
          %v268 = vpop.xlane.xlu0 %267
          %v269 = vadd.f32 %v198, %v268
          %vm270 = vcmask 0
          %271 = vst.msk [vmem:[#allocation3] sm:$0x1] %vm270, %v269
          %272 = vst.msk [vmem:[#allocation2] sm:$0x1] %vm270, %v193
        $region32: #{cbow_forward.3} parent=23 // pred_fallthru
          _
        %p273 = scmp.eq.s32.totalorder %s17, 1
        // Predicated region
        $region33: #{cbow_forward.3} parent=23 // pred_check
          %p274 = pneg %p273
        $region34: #{cbow_forward.3} parent=23 // pred_check_branch
          %276 = sbr.rel (%p274) target = $region36
        $region35: #{cbow_forward.3} parent=23 // pred_region
          %v277 = vld [vmem:[%s117] sm:$0xff]
          %v278 = vld [vmem:[#allocation2] sm:$0x1]
          %v279 = vld [vmem:[#allocation3] sm:$0x1]
          %v280 = vlog2.pop %v279
          %v281 = vmul.f32 %v280, 0.6931472
          %v282 = vadd.f32 %v278, %v281
          %284 = vset.pattern.permute.xlu0 0
          %285 = vperm.xlu0 %284, %v282
          %v286 = vpop.permute.xlu0 %285
          %v288 = vlaneseq
          %v289 = vshrl.u32 %v288, 7
          %v290 = vsub.s32 0, %v289
          %v291 = vrot.slane %v286, %v290
          %v292 = vsub.f32 %v277, %v291
          %293 = vst [vmem:[#allocation4] sm:$0xff] %v292
        $region36: #{cbow_forward.3} parent=23 // pred_fallthru
          _
        // Predicated region
        $region37: #{cbow_forward.3} parent=23 // pred_check
          %p294 = pneg %p69
        $region38: #{cbow_forward.3} parent=23 // pred_check_branch
          %296 = sbr.rel (%p294) target = $region40
        $region39: #{cbow_forward.3} parent=23 // pred_region
          %s297 = smul.u32 8, %s18
          %s299 = ssub.s32 128, 128
          %300 = vsyncadd [#allocation5], %s299
          %s301 = smul.addr %s297, 16
          %s302 = scalar_lea.hbm %s1, %s301
          %s304 = sshll.u32 [#allocation4], 4
          %s305 = int_to_ptr.vmem [resolvable:$true] %s304
          %307 = dma.vmem_to_hbm [thread:$0]  %s305, 128, %s302, [#allocation5]
        $region40: #{cbow_forward.3} parent=23 // pred_fallthru
          _
        // Predicated region
        $region41: #{cbow_forward.3} parent=23 // pred_check
          %p308 = pneg %p69
        $region42: #{cbow_forward.3} parent=23 // pred_check_branch
          %310 = sbr.rel (%p308) target = $region44
        $region43: #{cbow_forward.3} parent=23 // pred_region
          %311 = dma.done [#allocation5], 128
        $region44: #{cbow_forward.3} parent=23 // pred_fallthru
          _
      $region24: #{cbow_forward.3} parent=5 // pred_fallthru
        _
      %p312 = scmp.le.s32.totalorder 2, %s8
      // Predicated region
      $region45: #{cbow_forward.3} parent=5 // pred_check
        %p313 = pneg %p312
      $region46: #{cbow_forward.3} parent=5 // pred_check_branch
        %315 = sbr.rel (%p313) target = $region48
      $region47: #{cbow_forward.3} parent=5 // pred_region
        %s316 = ssub.s32 %s8, 2
      $region48: #{cbow_forward.3} parent=5 // pred_fallthru
        _
    $region6: #{cbow_forward.3} parent=1 // loop_footer
      %s12 = sadd.s32 1, %s8
    $region7: #{cbow_forward.3} parent=1 // loop_footer_branch
      %7 = sbr.rel target = $region3
    $region8: #{cbow_forward.3} parent=1 // loop_exit
      _
    %317 = vsyncpa [#allocation5], 1
    %s318 = scalar_lea.sflag [#allocation5], 1
    %319 = vsyncpa %s318, 1

// kernel: cbow_forward.2
$region0: #{cbow_forward.2}
  #allocation0 [shape = 'u32[]', space=smem, size = 0x4, offset = 0x4, fixed_abs, tag = 'smem constant byte address 0x4 - core index']
  #allocation1 [shape = 'u32[144,128]{1,0:T(1,128)}', space=vmem, size = 0x12000, scoped, tag = 'internal scratch']
  %s0 = inlined_call_operand.vmem [shape: f32[1,512], index: 0, kind: input, shape index: {}]
  %s1 = inlined_call_operand.hbm [shape: bf16[512,1024], index: 1, kind: input, shape index: {}]
  %s2 = inlined_call_operand.vmem [shape: f32[1,1024], index: 2, kind: input, shape index: {}]
  %s3 = inlined_call_operand.vmem [shape: f32[1,1024], index: 3, kind: output, shape index: {}]
  %s4 = sld [smem:[#allocation0]]
  $region49: #{cbow_forward.2} parent=0
    _
  %s6 = ssub.s32 1, %s4
  %s7 = scalar_select 0, %s6, %s4
  $region1: #{cbow_forward.2} parent=0
    #allocation2 [shape = 'u8[1048576]{0}', space=vmem, size = 0x100000, scoped, tag = 'input window, operand 1']
    #allocation3 [shape = 's32[2]{0}', space=sflag, size = 0x8, scoped, tag = 'scoped memory for cbow_forward.2']
    %8 = vsyncpa [#allocation3], 0
    %s9 = scalar_lea.sflag [#allocation3], 1
    %10 = vsyncpa %s9, 0
    loop: start=0, step=1, limit=4
    $region2: #{cbow_forward.2} parent=1 // loop_pre_header
      _
    $region3: #{cbow_forward.2} parent=1 // loop_header
      %s12 = sphi 0, %s16
      %p13 = scmp.ge.s32.totalorder %s12, 4
      %s20 = sphi 0, %s20
      %s22 = sphi 0, %s20
      %s23 = sphi 0, %s22
      %s37 = sphi 0, %s23
      %s43 = sphi 0, %s45
      %s46 = sphi 0, %s43
      %s47 = sphi 0, %s46
      %s63 = sphi 0, %s47
      %s69 = sphi 0, %s71
      %s72 = sphi 0, %s69
      %s73 = sphi 0, %s72
      %s89 = sphi 0, %s73
      %s95 = sphi 0, %s97
      %s98 = sphi 0, %s95
      %s99 = sphi 0, %s98
      %s115 = sphi 0, %s99
    $region4: #{cbow_forward.2} parent=1 // loop_header_branch
      %15 = sbr.rel (%p13) target = $region8
    $region5: #{cbow_forward.2} parent=1 // loop_body
      %s17 = ssub.s32 %s12, 1
      %s18 = ssub.s32 %s12, 2
      %s19 = sadd.s32 %s12, 1
      %s21 = sadd.s32 %s20, 1
      %p24 = scmp.eq.s32.totalorder %s12, 1
      %p25 = scmp.ne.s32.totalorder %s20, %s22
      %p26 = scmp.eq.s32.totalorder %s12, 0
      %p27 = por %p25, %p26
      %p28 = scmp.ne.s32.totalorder %s20, %s22
      %p29 = scmp.eq.s32.totalorder %s17, 1
      %p30 = por %p28, %p29
      %p31 = scmp.ne.s32.totalorder %s22, %s23
      %p32 = scmp.eq.s32.totalorder %s17, 0
      %p33 = por %p31, %p32
      %p34 = scmp.ne.s32.totalorder %s22, %s23
      %p35 = scmp.eq.s32.totalorder %s18, 1
      %p36 = por %p34, %p35
      %p38 = scmp.ne.s32.totalorder %s23, %s37
      %p39 = scmp.eq.s32.totalorder %s18, 0
      %p40 = por %p38, %p39
      %s41 = ssub.s32 %s12, %s19
      %p42 = scmp.eq.s32.totalorder %s41, 0
      %s44 = sadd.s32 %s43, 1
      %s45 = scalar_select %p42, %s43, %s44
      %p48 = pneg %p42
      %p49 = scmp.eq.s32.totalorder %s12, 1
      %p50 = por %p48, %p49
      %p51 = scmp.ne.s32.totalorder %s43, %s46
      %p52 = scmp.eq.s32.totalorder %s12, 0
      %p53 = por %p51, %p52
      %p54 = scmp.ne.s32.totalorder %s43, %s46
      %p55 = scmp.eq.s32.totalorder %s17, 1
      %p56 = por %p54, %p55
      %p57 = scmp.ne.s32.totalorder %s46, %s47
      %p58 = scmp.eq.s32.totalorder %s17, 0
      %p59 = por %p57, %p58
      %p60 = scmp.ne.s32.totalorder %s46, %s47
      %p61 = scmp.eq.s32.totalorder %s18, 1
      %p62 = por %p60, %p61
      %p64 = scmp.ne.s32.totalorder %s47, %s63
      %p65 = scmp.eq.s32.totalorder %s18, 0
      %p66 = por %p64, %p65
      %s67 = ssub.s32 %s12, %s19
      %p68 = scmp.eq.s32.totalorder %s67, 0
      %s70 = sadd.s32 %s69, 1
      %s71 = scalar_select %p68, %s69, %s70
      %p74 = pneg %p68
      %p75 = scmp.eq.s32.totalorder %s12, 1
      %p76 = por %p74, %p75
      %p77 = scmp.ne.s32.totalorder %s69, %s72
      %p78 = scmp.eq.s32.totalorder %s12, 0
      %p79 = por %p77, %p78
      %p80 = scmp.ne.s32.totalorder %s69, %s72
      %p81 = scmp.eq.s32.totalorder %s17, 1
      %p82 = por %p80, %p81
      %p83 = scmp.ne.s32.totalorder %s72, %s73
      %p84 = scmp.eq.s32.totalorder %s17, 0
      %p85 = por %p83, %p84
      %p86 = scmp.ne.s32.totalorder %s72, %s73
      %p87 = scmp.eq.s32.totalorder %s18, 1
      %p88 = por %p86, %p87
      %p90 = scmp.ne.s32.totalorder %s73, %s89
      %p91 = scmp.eq.s32.totalorder %s18, 0
      %p92 = por %p90, %p91
      %s93 = ssub.s32 %s12, %s19
      %p94 = scmp.eq.s32.totalorder %s93, 0
      %s96 = sadd.s32 %s95, 1
      %s97 = scalar_select %p94, %s95, %s96
      %p100 = pneg %p94
      %p101 = scmp.eq.s32.totalorder %s12, 1
      %p102 = por %p100, %p101
      %p103 = scmp.ne.s32.totalorder %s95, %s98
      %p104 = scmp.eq.s32.totalorder %s12, 0
      %p105 = por %p103, %p104
      %p106 = scmp.ne.s32.totalorder %s95, %s98
      %p107 = scmp.eq.s32.totalorder %s17, 1
      %p108 = por %p106, %p107
      %p109 = scmp.ne.s32.totalorder %s98, %s99
      %p110 = scmp.eq.s32.totalorder %s17, 0
      %p111 = por %p109, %p110
      %p112 = scmp.ne.s32.totalorder %s98, %s99
      %p113 = scmp.eq.s32.totalorder %s18, 1
      %p114 = por %p112, %p113
      %p116 = scmp.ne.s32.totalorder %s99, %s115
      %p117 = scmp.eq.s32.totalorder %s18, 0
      %p118 = por %p116, %p117
      %p119 = scmp.le.s32.totalorder 1, %s12
      %p120 = scmp.lt.s32.totalorder %s12, 3
      %p121 = pnand %p119, %p120
      %p122 = pneg %p121
      // Predicated region
      $region9: #{cbow_forward.2} parent=5 // pred_check
        _
      $region10: #{cbow_forward.2} parent=5 // pred_check_branch
        %124 = sbr.rel (%p121) target = $region12
      $region11: #{cbow_forward.2} parent=5 // pred_region
        %s125 = ssub.s32 %s12, 1
        // Predicated region
        $region13: #{cbow_forward.2} parent=11 // pred_check
          %p126 = pneg %p33
        $region14: #{cbow_forward.2} parent=11 // pred_check_branch
          %128 = sbr.rel (%p126) target = $region16
        $region15: #{cbow_forward.2} parent=11 // pred_region
          _
        $region16: #{cbow_forward.2} parent=11 // pred_fallthru
          _
      $region12: #{cbow_forward.2} parent=5 // pred_fallthru
        _
      %p129 = scmp.lt.s32.totalorder %s12, 2
      // Predicated region
      $region17: #{cbow_forward.2} parent=5 // pred_check
        %p130 = pneg %p129
      $region18: #{cbow_forward.2} parent=5 // pred_check_branch
        %132 = sbr.rel (%p130) target = $region20
      $region19: #{cbow_forward.2} parent=5 // pred_region
        // Predicated region
        $region21: #{cbow_forward.2} parent=19 // pred_check
          %p133 = pneg %p53
        $region22: #{cbow_forward.2} parent=19 // pred_check_branch
          %135 = sbr.rel (%p133) target = $region24
        $region23: #{cbow_forward.2} parent=19 // pred_region
          %s136 = sand.u32 %s43, 1
          %s137 = scalar_lea.sflag [#allocation3], %s136
          %s138 = sand.u32 %s43, 1
          %s139 = smul.addr %s138, 1024
          %s140 = scalar_lea.vmem [#allocation2], %s139
          %s141 = smul.u32 4, %s12
          %s143 = ssub.s32 16384, 16384
          %144 = vsyncadd %s137, %s143
          %s145 = smul.addr %s141, 64
          %s146 = scalar_lea.hbm %s1, %s145
          %s147 = sshll.u32 %s140, 4
          %s148 = int_to_ptr.vmem [resolvable:$true] %s147
          %153 = dma.hbm_to_vmem [thread:$0]  %s146, 16384, %s148, %s137, 512, 256, 16
        $region24: #{cbow_forward.2} parent=19 // pred_fallthru
          _
        // Predicated region
        $region25: #{cbow_forward.2} parent=19 // pred_check
          %p154 = pneg %p79
        $region26: #{cbow_forward.2} parent=19 // pred_check_branch
          %156 = sbr.rel (%p154) target = $region28
        $region27: #{cbow_forward.2} parent=19 // pred_region
          %s157 = smul.u32 4, %s12
          %p158 = scmp.lt.s32.totalorder %s157, 7
          %s159 = scalar_select %p158, %s157, 7
          %s160 = scalar_lea.vmem %s2, %s159
          %s161 = smul.u32 4, %s12
        $region28: #{cbow_forward.2} parent=19 // pred_fallthru
          _
      $region20: #{cbow_forward.2} parent=5 // pred_fallthru
        _
      %p162 = scmp.le.s32.totalorder 1, %s12
      %p163 = scmp.lt.s32.totalorder %s12, 3
      %p164 = pnand %p162, %p163
      %p165 = pneg %p164
      // Predicated region
      $region29: #{cbow_forward.2} parent=5 // pred_check
        _
      $region30: #{cbow_forward.2} parent=5 // pred_check_branch
        %167 = sbr.rel (%p164) target = $region32
      $region31: #{cbow_forward.2} parent=5 // pred_region
        %s168 = ssub.s32 %s12, 1
        %s169 = sand.u32 %s46, 1
        %s170 = scalar_lea.sflag [#allocation3], %s169
        %s171 = sand.u32 %s46, 1
        %s172 = smul.addr %s171, 1024
        %s173 = scalar_lea.vmem [#allocation2], %s172
        // Predicated region
        $region33: #{cbow_forward.2} parent=31 // pred_check
          %p174 = pneg %p59
        $region34: #{cbow_forward.2} parent=31 // pred_check_branch
          %176 = sbr.rel (%p174) target = $region36
        $region35: #{cbow_forward.2} parent=31 // pred_region
          %177 = dma.done %s170, 16384
        $region36: #{cbow_forward.2} parent=31 // pred_fallthru
          _
        %p178 = pneg %p33
        %p179 = pneg %p30
        %s180 = sand.u32 %s46, 1
        %s181 = scalar_lea.sflag [#allocation3], %s180
        %s182 = sand.u32 %s46, 1
        %s183 = smul.addr %s182, 1024
        %s184 = scalar_lea.vmem [#allocation2], %s183
        %p185 = pneg %p59
        %p186 = pneg %p56
        %s187 = smul.u32 4, %s17
        %p188 = scmp.lt.s32.totalorder %s187, 7
        %s189 = scalar_select %p188, %s187, 7
        %s190 = scalar_lea.vmem %s2, %s189
        %p191 = pneg %p85
        %p192 = pneg %p82
        %p193 = pneg %p111
        %p194 = pneg %p108
        %s195 = smul.u32 4, %s17
        %p196 = scmp.lt.s32.totalorder %s195, 7
        %s197 = scalar_select %p196, %s195, 7
        %s198 = scalar_lea.vmem %s3, %s197
        %s199 = smul.u32 4, %s17
        %s200 = smul.u32 4, %s17
        %p201 = scmp.lt.s32.totalorder %s200, 7
        %s202 = scalar_select %p201, %s200, 7
        %s203 = scalar_lea.vmem %s2, %s202
        %s204 = smul.u32 4, %s17
        %s205 = smul.u32 4, %s17
        %p206 = scmp.lt.s32.totalorder %s205, 7
        %s207 = scalar_select %p206, %s205, 7
        %s208 = scalar_lea.vmem %s3, %s207
        %s209 = smul.u32 4, %s17
        %v210 = vld [vmem:[%s0] sm:$0xf]
        %v212 = vlaneseq
        %v213 = vshrl.u32 %v212, 7
        %v214 = vsub.s32 0, %v213
        %v215 = vrot.slane %v210, %v214
        %v216 = vlaneseq
        %v217 = vshrl.u32 %v216, 7
        %v218 = vsub.s32 1, %v217
        %v219 = vrot.slane %v210, %v218
        %v220 = vlaneseq
        %v221 = vshrl.u32 %v220, 7
        %v222 = vsub.s32 2, %v221
        %v223 = vrot.slane %v210, %v222
        %v224 = vlaneseq
        %v225 = vshrl.u32 %v224, 7
        %v226 = vsub.s32 3, %v225
        %v227 = vrot.slane %v210, %v226
        %v232 = vpack.c.bf16 %v215, %v215
        %v233 = vpack.c.bf16 %v219, %v219
        %v234 = vpack.c.bf16 %v223, %v223
        %v235 = vpack.c.bf16 %v227, %v227
        %v236 = vld [vmem:[%s173] sm:$0xff]
        %v237 = vld [vmem:[%s173 + $0x8] sm:$0xff]
        %v238 = vld [vmem:[%s173 + $0x10] sm:$0xff]
        %v239 = vld [vmem:[%s173 + $0x18] sm:$0xff]
        %v240 = vld [vmem:[%s173 + $0x20] sm:$0xff]
        %v241 = vld [vmem:[%s173 + $0x28] sm:$0xff]
        %v242 = vld [vmem:[%s173 + $0x30] sm:$0xff]
        %v243 = vld [vmem:[%s173 + $0x38] sm:$0xff]
        %v244 = vld [vmem:[%s173 + $0x40] sm:$0xff]
        %v245 = vld [vmem:[%s173 + $0x48] sm:$0xff]
        %v246 = vld [vmem:[%s173 + $0x50] sm:$0xff]
        %v247 = vld [vmem:[%s173 + $0x58] sm:$0xff]
        %v248 = vld [vmem:[%s173 + $0x60] sm:$0xff]
        %v249 = vld [vmem:[%s173 + $0x68] sm:$0xff]
        %v250 = vld [vmem:[%s173 + $0x70] sm:$0xff]
        %v251 = vld [vmem:[%s173 + $0x78] sm:$0xff]
        %v252 = vld [vmem:[%s173 + $0x80] sm:$0xff]
        %v253 = vld [vmem:[%s173 + $0x88] sm:$0xff]
        %v254 = vld [vmem:[%s173 + $0x90] sm:$0xff]
        %v255 = vld [vmem:[%s173 + $0x98] sm:$0xff]
        %v256 = vld [vmem:[%s173 + $0xa0] sm:$0xff]
        %v257 = vld [vmem:[%s173 + $0xa8] sm:$0xff]
        %v258 = vld [vmem:[%s173 + $0xb0] sm:$0xff]
        %v259 = vld [vmem:[%s173 + $0xb8] sm:$0xff]
        %v260 = vld [vmem:[%s173 + $0xc0] sm:$0xff]
        %v261 = vld [vmem:[%s173 + $0xc8] sm:$0xff]
        %v262 = vld [vmem:[%s173 + $0xd0] sm:$0xff]
        %v263 = vld [vmem:[%s173 + $0xd8] sm:$0xff]
        %v264 = vld [vmem:[%s173 + $0xe0] sm:$0xff]
        %v265 = vld [vmem:[%s173 + $0xe8] sm:$0xff]
        %v266 = vld [vmem:[%s173 + $0xf0] sm:$0xff]
        %v267 = vld [vmem:[%s173 + $0xf8] sm:$0xff]
        %v268 = vld [vmem:[%s173 + $0x100] sm:$0xff]
        %v269 = vld [vmem:[%s173 + $0x108] sm:$0xff]
        %v270 = vld [vmem:[%s173 + $0x110] sm:$0xff]
        %v271 = vld [vmem:[%s173 + $0x118] sm:$0xff]
        %v272 = vld [vmem:[%s173 + $0x120] sm:$0xff]
        %v273 = vld [vmem:[%s173 + $0x128] sm:$0xff]
        %v274 = vld [vmem:[%s173 + $0x130] sm:$0xff]
        %v275 = vld [vmem:[%s173 + $0x138] sm:$0xff]
        %v276 = vld [vmem:[%s173 + $0x140] sm:$0xff]
        %v277 = vld [vmem:[%s173 + $0x148] sm:$0xff]
        %v278 = vld [vmem:[%s173 + $0x150] sm:$0xff]
        %v279 = vld [vmem:[%s173 + $0x158] sm:$0xff]
        %v280 = vld [vmem:[%s173 + $0x160] sm:$0xff]
        %v281 = vld [vmem:[%s173 + $0x168] sm:$0xff]
        %v282 = vld [vmem:[%s173 + $0x170] sm:$0xff]
        %v283 = vld [vmem:[%s173 + $0x178] sm:$0xff]
        %v284 = vld [vmem:[%s173 + $0x180] sm:$0xff]
        %v285 = vld [vmem:[%s173 + $0x188] sm:$0xff]
        %v286 = vld [vmem:[%s173 + $0x190] sm:$0xff]
        %v287 = vld [vmem:[%s173 + $0x198] sm:$0xff]
        %v288 = vld [vmem:[%s173 + $0x1a0] sm:$0xff]
        %v289 = vld [vmem:[%s173 + $0x1a8] sm:$0xff]
        %v290 = vld [vmem:[%s173 + $0x1b0] sm:$0xff]
        %v291 = vld [vmem:[%s173 + $0x1b8] sm:$0xff]
        %v292 = vld [vmem:[%s173 + $0x1c0] sm:$0xff]
        %v293 = vld [vmem:[%s173 + $0x1c8] sm:$0xff]
        %v294 = vld [vmem:[%s173 + $0x1d0] sm:$0xff]
        %v295 = vld [vmem:[%s173 + $0x1d8] sm:$0xff]
        %v296 = vld [vmem:[%s173 + $0x1e0] sm:$0xff]
        %v297 = vld [vmem:[%s173 + $0x1e8] sm:$0xff]
        %v298 = vld [vmem:[%s173 + $0x1f0] sm:$0xff]
        %v299 = vld [vmem:[%s173 + $0x1f8] sm:$0xff]
        %v300 = vld [vmem:[%s173 + $0x200] sm:$0xff]
        %v301 = vld [vmem:[%s173 + $0x208] sm:$0xff]
        %v302 = vld [vmem:[%s173 + $0x210] sm:$0xff]
        %v303 = vld [vmem:[%s173 + $0x218] sm:$0xff]
        %v304 = vld [vmem:[%s173 + $0x220] sm:$0xff]
        %v305 = vld [vmem:[%s173 + $0x228] sm:$0xff]
        %v306 = vld [vmem:[%s173 + $0x230] sm:$0xff]
        %v307 = vld [vmem:[%s173 + $0x238] sm:$0xff]
        %v308 = vld [vmem:[%s173 + $0x240] sm:$0xff]
        %v309 = vld [vmem:[%s173 + $0x248] sm:$0xff]
        %v310 = vld [vmem:[%s173 + $0x250] sm:$0xff]
        %v311 = vld [vmem:[%s173 + $0x258] sm:$0xff]
        %v312 = vld [vmem:[%s173 + $0x260] sm:$0xff]
        %v313 = vld [vmem:[%s173 + $0x268] sm:$0xff]
        %v314 = vld [vmem:[%s173 + $0x270] sm:$0xff]
        %v315 = vld [vmem:[%s173 + $0x278] sm:$0xff]
        %v316 = vld [vmem:[%s173 + $0x280] sm:$0xff]
        %v317 = vld [vmem:[%s173 + $0x288] sm:$0xff]
        %v318 = vld [vmem:[%s173 + $0x290] sm:$0xff]
        %v319 = vld [vmem:[%s173 + $0x298] sm:$0xff]
        %v320 = vld [vmem:[%s173 + $0x2a0] sm:$0xff]
        %v321 = vld [vmem:[%s173 + $0x2a8] sm:$0xff]
        %v322 = vld [vmem:[%s173 + $0x2b0] sm:$0xff]
        %v323 = vld [vmem:[%s173 + $0x2b8] sm:$0xff]
        %v324 = vld [vmem:[%s173 + $0x2c0] sm:$0xff]
        %v325 = vld [vmem:[%s173 + $0x2c8] sm:$0xff]
        %v326 = vld [vmem:[%s173 + $0x2d0] sm:$0xff]
        %v327 = vld [vmem:[%s173 + $0x2d8] sm:$0xff]
        %v328 = vld [vmem:[%s173 + $0x2e0] sm:$0xff]
        %v329 = vld [vmem:[%s173 + $0x2e8] sm:$0xff]
        %v330 = vld [vmem:[%s173 + $0x2f0] sm:$0xff]
        %v331 = vld [vmem:[%s173 + $0x2f8] sm:$0xff]
        %v332 = vld [vmem:[%s173 + $0x300] sm:$0xff]
        %v333 = vld [vmem:[%s173 + $0x308] sm:$0xff]
        %v334 = vld [vmem:[%s173 + $0x310] sm:$0xff]
        %v335 = vld [vmem:[%s173 + $0x318] sm:$0xff]
        %v336 = vld [vmem:[%s173 + $0x320] sm:$0xff]
        %v337 = vld [vmem:[%s173 + $0x328] sm:$0xff]
        %v338 = vld [vmem:[%s173 + $0x330] sm:$0xff]
        %v339 = vld [vmem:[%s173 + $0x338] sm:$0xff]
        %v340 = vld [vmem:[%s173 + $0x340] sm:$0xff]
        %v341 = vld [vmem:[%s173 + $0x348] sm:$0xff]
        %v342 = vld [vmem:[%s173 + $0x350] sm:$0xff]
        %v343 = vld [vmem:[%s173 + $0x358] sm:$0xff]
        %v344 = vld [vmem:[%s173 + $0x360] sm:$0xff]
        %v345 = vld [vmem:[%s173 + $0x368] sm:$0xff]
        %v346 = vld [vmem:[%s173 + $0x370] sm:$0xff]
        %v347 = vld [vmem:[%s173 + $0x378] sm:$0xff]
        %v348 = vld [vmem:[%s173 + $0x380] sm:$0xff]
        %v349 = vld [vmem:[%s173 + $0x388] sm:$0xff]
        %v350 = vld [vmem:[%s173 + $0x390] sm:$0xff]
        %v351 = vld [vmem:[%s173 + $0x398] sm:$0xff]
        %v352 = vld [vmem:[%s173 + $0x3a0] sm:$0xff]
        %v353 = vld [vmem:[%s173 + $0x3a8] sm:$0xff]
        %v354 = vld [vmem:[%s173 + $0x3b0] sm:$0xff]
        %v355 = vld [vmem:[%s173 + $0x3b8] sm:$0xff]
        %v356 = vld [vmem:[%s173 + $0x3c0] sm:$0xff]
        %v357 = vld [vmem:[%s173 + $0x3c8] sm:$0xff]
        %v358 = vld [vmem:[%s173 + $0x3d0] sm:$0xff]
        %v359 = vld [vmem:[%s173 + $0x3d8] sm:$0xff]
        %v360 = vld [vmem:[%s173 + $0x3e0] sm:$0xff]
        %v361 = vld [vmem:[%s173 + $0x3e8] sm:$0xff]
        %v362 = vld [vmem:[%s173 + $0x3f0] sm:$0xff]
        %v363 = vld [vmem:[%s173 + $0x3f8] sm:$0xff]
        %v364 = vld [vmem:[%s203] sm:$0xf]
        %v493 = vunpack.c.l.b16 %v236
        %v494 = vunpack.c.h.b16 %v236
        %v495 = vunpack.c.l.b16 %v237
        %v496 = vunpack.c.h.b16 %v237
        %v497 = vunpack.c.l.b16 %v238
        %v498 = vunpack.c.h.b16 %v238
        %v499 = vunpack.c.l.b16 %v239
        %v500 = vunpack.c.h.b16 %v239
        %v501 = vunpack.c.l.b16 %v240
        %v502 = vunpack.c.h.b16 %v240
        %v503 = vunpack.c.l.b16 %v241
        %v504 = vunpack.c.h.b16 %v241
        %v505 = vunpack.c.l.b16 %v242
        %v506 = vunpack.c.h.b16 %v242
        %v507 = vunpack.c.l.b16 %v243
        %v508 = vunpack.c.h.b16 %v243
        %v509 = vunpack.c.l.b16 %v244
        %v510 = vunpack.c.h.b16 %v244
        %v511 = vunpack.c.l.b16 %v245
        %v512 = vunpack.c.h.b16 %v245
        %v513 = vunpack.c.l.b16 %v246
        %v514 = vunpack.c.h.b16 %v246
        %v515 = vunpack.c.l.b16 %v247
        %v516 = vunpack.c.h.b16 %v247
        %v517 = vunpack.c.l.b16 %v248
        %v518 = vunpack.c.h.b16 %v248
        %v519 = vunpack.c.l.b16 %v249
        %v520 = vunpack.c.h.b16 %v249
        %v521 = vunpack.c.l.b16 %v250
        %v522 = vunpack.c.h.b16 %v250
        %v523 = vunpack.c.l.b16 %v251
        %v524 = vunpack.c.h.b16 %v251
        %v525 = vunpack.c.l.b16 %v252
        %v526 = vunpack.c.h.b16 %v252
        %v527 = vunpack.c.l.b16 %v253
        %v528 = vunpack.c.h.b16 %v253
        %v529 = vunpack.c.l.b16 %v254
        %v530 = vunpack.c.h.b16 %v254
        %v531 = vunpack.c.l.b16 %v255
        %v532 = vunpack.c.h.b16 %v255
        %v533 = vunpack.c.l.b16 %v256
        %v534 = vunpack.c.h.b16 %v256
        %v535 = vunpack.c.l.b16 %v257
        %v536 = vunpack.c.h.b16 %v257
        %v537 = vunpack.c.l.b16 %v258
        %v538 = vunpack.c.h.b16 %v258
        %v539 = vunpack.c.l.b16 %v259
        %v540 = vunpack.c.h.b16 %v259
        %v541 = vunpack.c.l.b16 %v260
        %v542 = vunpack.c.h.b16 %v260
        %v543 = vunpack.c.l.b16 %v261
        %v544 = vunpack.c.h.b16 %v261
        %v545 = vunpack.c.l.b16 %v262
        %v546 = vunpack.c.h.b16 %v262
        %v547 = vunpack.c.l.b16 %v263
        %v548 = vunpack.c.h.b16 %v263
        %v549 = vunpack.c.l.b16 %v264
        %v550 = vunpack.c.h.b16 %v264
        %v551 = vunpack.c.l.b16 %v265
        %v552 = vunpack.c.h.b16 %v265
        %v553 = vunpack.c.l.b16 %v266
        %v554 = vunpack.c.h.b16 %v266
        %v555 = vunpack.c.l.b16 %v267
        %v556 = vunpack.c.h.b16 %v267
        %v557 = vunpack.c.l.b16 %v268
        %v558 = vunpack.c.h.b16 %v268
        %v559 = vunpack.c.l.b16 %v269
        %v560 = vunpack.c.h.b16 %v269
        %v561 = vunpack.c.l.b16 %v270
        %v562 = vunpack.c.h.b16 %v270
        %v563 = vunpack.c.l.b16 %v271
        %v564 = vunpack.c.h.b16 %v271
        %v565 = vunpack.c.l.b16 %v272
        %v566 = vunpack.c.h.b16 %v272
        %v567 = vunpack.c.l.b16 %v273
        %v568 = vunpack.c.h.b16 %v273
        %v569 = vunpack.c.l.b16 %v274
        %v570 = vunpack.c.h.b16 %v274
        %v571 = vunpack.c.l.b16 %v275
        %v572 = vunpack.c.h.b16 %v275
        %v573 = vunpack.c.l.b16 %v276
        %v574 = vunpack.c.h.b16 %v276
        %v575 = vunpack.c.l.b16 %v277
        %v576 = vunpack.c.h.b16 %v277
        %v577 = vunpack.c.l.b16 %v278
        %v578 = vunpack.c.h.b16 %v278
        %v579 = vunpack.c.l.b16 %v279
        %v580 = vunpack.c.h.b16 %v279
        %v581 = vunpack.c.l.b16 %v280
        %v582 = vunpack.c.h.b16 %v280
        %v583 = vunpack.c.l.b16 %v281
        %v584 = vunpack.c.h.b16 %v281
        %v585 = vunpack.c.l.b16 %v282
        %v586 = vunpack.c.h.b16 %v282
        %v587 = vunpack.c.l.b16 %v283
        %v588 = vunpack.c.h.b16 %v283
        %v589 = vunpack.c.l.b16 %v284
        %v590 = vunpack.c.h.b16 %v284
        %v591 = vunpack.c.l.b16 %v285
        %v592 = vunpack.c.h.b16 %v285
        %v593 = vunpack.c.l.b16 %v286
        %v594 = vunpack.c.h.b16 %v286
        %v595 = vunpack.c.l.b16 %v287
        %v596 = vunpack.c.h.b16 %v287
        %v597 = vunpack.c.l.b16 %v288
        %v598 = vunpack.c.h.b16 %v288
        %v599 = vunpack.c.l.b16 %v289
        %v600 = vunpack.c.h.b16 %v289
        %v601 = vunpack.c.l.b16 %v290
        %v602 = vunpack.c.h.b16 %v290
        %v603 = vunpack.c.l.b16 %v291
        %v604 = vunpack.c.h.b16 %v291
        %v605 = vunpack.c.l.b16 %v292
        %v606 = vunpack.c.h.b16 %v292
        %v607 = vunpack.c.l.b16 %v293
        %v608 = vunpack.c.h.b16 %v293
        %v609 = vunpack.c.l.b16 %v294
        %v610 = vunpack.c.h.b16 %v294
        %v611 = vunpack.c.l.b16 %v295
        %v612 = vunpack.c.h.b16 %v295
        %v613 = vunpack.c.l.b16 %v296
        %v614 = vunpack.c.h.b16 %v296
        %v615 = vunpack.c.l.b16 %v297
        %v616 = vunpack.c.h.b16 %v297
        %v617 = vunpack.c.l.b16 %v298
        %v618 = vunpack.c.h.b16 %v298
        %v619 = vunpack.c.l.b16 %v299
        %v620 = vunpack.c.h.b16 %v299
        %v621 = vunpack.c.l.b16 %v300
        %v622 = vunpack.c.h.b16 %v300
        %v623 = vunpack.c.l.b16 %v301
        %v624 = vunpack.c.h.b16 %v301
        %v625 = vunpack.c.l.b16 %v302
        %v626 = vunpack.c.h.b16 %v302
        %v627 = vunpack.c.l.b16 %v303
        %v628 = vunpack.c.h.b16 %v303
        %v629 = vunpack.c.l.b16 %v304
        %v630 = vunpack.c.h.b16 %v304
        %v631 = vunpack.c.l.b16 %v305
        %v632 = vunpack.c.h.b16 %v305
        %v633 = vunpack.c.l.b16 %v306
        %v634 = vunpack.c.h.b16 %v306
        %v635 = vunpack.c.l.b16 %v307
        %v636 = vunpack.c.h.b16 %v307
        %v637 = vunpack.c.l.b16 %v308
        %v638 = vunpack.c.h.b16 %v308
        %v639 = vunpack.c.l.b16 %v309
        %v640 = vunpack.c.h.b16 %v309
        %v641 = vunpack.c.l.b16 %v310
        %v642 = vunpack.c.h.b16 %v310
        %v643 = vunpack.c.l.b16 %v311
        %v644 = vunpack.c.h.b16 %v311
        %v645 = vunpack.c.l.b16 %v312
        %v646 = vunpack.c.h.b16 %v312
        %v647 = vunpack.c.l.b16 %v313
        %v648 = vunpack.c.h.b16 %v313
        %v649 = vunpack.c.l.b16 %v314
        %v650 = vunpack.c.h.b16 %v314
        %v651 = vunpack.c.l.b16 %v315
        %v652 = vunpack.c.h.b16 %v315
        %v653 = vunpack.c.l.b16 %v316
        %v654 = vunpack.c.h.b16 %v316
        %v655 = vunpack.c.l.b16 %v317
        %v656 = vunpack.c.h.b16 %v317
        %v657 = vunpack.c.l.b16 %v318
        %v658 = vunpack.c.h.b16 %v318
        %v659 = vunpack.c.l.b16 %v319
        %v660 = vunpack.c.h.b16 %v319
        %v661 = vunpack.c.l.b16 %v320
        %v662 = vunpack.c.h.b16 %v320
        %v663 = vunpack.c.l.b16 %v321
        %v664 = vunpack.c.h.b16 %v321
        %v665 = vunpack.c.l.b16 %v322
        %v666 = vunpack.c.h.b16 %v322
        %v667 = vunpack.c.l.b16 %v323
        %v668 = vunpack.c.h.b16 %v323
        %v669 = vunpack.c.l.b16 %v324
        %v670 = vunpack.c.h.b16 %v324
        %v671 = vunpack.c.l.b16 %v325
        %v672 = vunpack.c.h.b16 %v325
        %v673 = vunpack.c.l.b16 %v326
        %v674 = vunpack.c.h.b16 %v326
        %v675 = vunpack.c.l.b16 %v327
        %v676 = vunpack.c.h.b16 %v327
        %v677 = vunpack.c.l.b16 %v328
        %v678 = vunpack.c.h.b16 %v328
        %v679 = vunpack.c.l.b16 %v329
        %v680 = vunpack.c.h.b16 %v329
        %v681 = vunpack.c.l.b16 %v330
        %v682 = vunpack.c.h.b16 %v330
        %v683 = vunpack.c.l.b16 %v331
        %v684 = vunpack.c.h.b16 %v331
        %v685 = vunpack.c.l.b16 %v332
        %v686 = vunpack.c.h.b16 %v332
        %v687 = vunpack.c.l.b16 %v333
        %v688 = vunpack.c.h.b16 %v333
        %v689 = vunpack.c.l.b16 %v334
        %v690 = vunpack.c.h.b16 %v334
        %v691 = vunpack.c.l.b16 %v335
        %v692 = vunpack.c.h.b16 %v335
        %v693 = vunpack.c.l.b16 %v336
        %v694 = vunpack.c.h.b16 %v336
        %v695 = vunpack.c.l.b16 %v337
        %v696 = vunpack.c.h.b16 %v337
        %v697 = vunpack.c.l.b16 %v338
        %v698 = vunpack.c.h.b16 %v338
        %v699 = vunpack.c.l.b16 %v339
        %v700 = vunpack.c.h.b16 %v339
        %v701 = vunpack.c.l.b16 %v340
        %v702 = vunpack.c.h.b16 %v340
        %v703 = vunpack.c.l.b16 %v341
        %v704 = vunpack.c.h.b16 %v341
        %v705 = vunpack.c.l.b16 %v342
        %v706 = vunpack.c.h.b16 %v342
        %v707 = vunpack.c.l.b16 %v343
        %v708 = vunpack.c.h.b16 %v343
        %v709 = vunpack.c.l.b16 %v344
        %v710 = vunpack.c.h.b16 %v344
        %v711 = vunpack.c.l.b16 %v345
        %v712 = vunpack.c.h.b16 %v345
        %v713 = vunpack.c.l.b16 %v346
        %v714 = vunpack.c.h.b16 %v346
        %v715 = vunpack.c.l.b16 %v347
        %v716 = vunpack.c.h.b16 %v347
        %v717 = vunpack.c.l.b16 %v348
        %v718 = vunpack.c.h.b16 %v348
        %v719 = vunpack.c.l.b16 %v349
        %v720 = vunpack.c.h.b16 %v349
        %v721 = vunpack.c.l.b16 %v350
        %v722 = vunpack.c.h.b16 %v350
        %v723 = vunpack.c.l.b16 %v351
        %v724 = vunpack.c.h.b16 %v351
        %v725 = vunpack.c.l.b16 %v352
        %v726 = vunpack.c.h.b16 %v352
        %v727 = vunpack.c.l.b16 %v353
        %v728 = vunpack.c.h.b16 %v353
        %v729 = vunpack.c.l.b16 %v354
        %v730 = vunpack.c.h.b16 %v354
        %v731 = vunpack.c.l.b16 %v355
        %v732 = vunpack.c.h.b16 %v355
        %v733 = vunpack.c.l.b16 %v356
        %v734 = vunpack.c.h.b16 %v356
        %v735 = vunpack.c.l.b16 %v357
        %v736 = vunpack.c.h.b16 %v357
        %v737 = vunpack.c.l.b16 %v358
        %v738 = vunpack.c.h.b16 %v358
        %v739 = vunpack.c.l.b16 %v359
        %v740 = vunpack.c.h.b16 %v359
        %v741 = vunpack.c.l.b16 %v360
        %v742 = vunpack.c.h.b16 %v360
        %v743 = vunpack.c.l.b16 %v361
        %v744 = vunpack.c.h.b16 %v361
        %v745 = vunpack.c.l.b16 %v362
        %v746 = vunpack.c.h.b16 %v362
        %v747 = vunpack.c.l.b16 %v363
        %v748 = vunpack.c.h.b16 %v363
        %v749 = vpack.c.b16 %v497, %v493
        %v750 = vpack.c.b16 %v498, %v494
        %v751 = vpack.c.b16 %v499, %v495
        %v752 = vpack.c.b16 %v500, %v496
        %v753 = vpack.c.b16 %v505, %v501
        %v754 = vpack.c.b16 %v506, %v502
        %v755 = vpack.c.b16 %v507, %v503
        %v756 = vpack.c.b16 %v508, %v504
        %v757 = vpack.c.b16 %v513, %v509
        %v758 = vpack.c.b16 %v514, %v510
        %v759 = vpack.c.b16 %v515, %v511
        %v760 = vpack.c.b16 %v516, %v512
        %v761 = vpack.c.b16 %v521, %v517
        %v762 = vpack.c.b16 %v522, %v518
        %v763 = vpack.c.b16 %v523, %v519
        %v764 = vpack.c.b16 %v524, %v520
        %v765 = vpack.c.b16 %v529, %v525
        %v766 = vpack.c.b16 %v530, %v526
        %v767 = vpack.c.b16 %v531, %v527
        %v768 = vpack.c.b16 %v532, %v528
        %v769 = vpack.c.b16 %v537, %v533
        %v770 = vpack.c.b16 %v538, %v534
        %v771 = vpack.c.b16 %v539, %v535
        %v772 = vpack.c.b16 %v540, %v536
        %v773 = vpack.c.b16 %v545, %v541
        %v774 = vpack.c.b16 %v546, %v542
        %v775 = vpack.c.b16 %v547, %v543
        %v776 = vpack.c.b16 %v548, %v544
        %v777 = vpack.c.b16 %v553, %v549
        %v778 = vpack.c.b16 %v554, %v550
        %v779 = vpack.c.b16 %v555, %v551
        %v780 = vpack.c.b16 %v556, %v552
        %v781 = vpack.c.b16 %v561, %v557
        %v782 = vpack.c.b16 %v562, %v558
        %v783 = vpack.c.b16 %v563, %v559
        %v784 = vpack.c.b16 %v564, %v560
        %v785 = vpack.c.b16 %v569, %v565
        %v786 = vpack.c.b16 %v570, %v566
        %v787 = vpack.c.b16 %v571, %v567
        %v788 = vpack.c.b16 %v572, %v568
        %v789 = vpack.c.b16 %v577, %v573
        %v790 = vpack.c.b16 %v578, %v574
        %v791 = vpack.c.b16 %v579, %v575
        %v792 = vpack.c.b16 %v580, %v576
        %v793 = vpack.c.b16 %v585, %v581
        %v794 = vpack.c.b16 %v586, %v582
        %v795 = vpack.c.b16 %v587, %v583
        %v796 = vpack.c.b16 %v588, %v584
        %v797 = vpack.c.b16 %v593, %v589
        %v798 = vpack.c.b16 %v594, %v590
        %v799 = vpack.c.b16 %v595, %v591
        %v800 = vpack.c.b16 %v596, %v592
        %v801 = vpack.c.b16 %v601, %v597
        %v802 = vpack.c.b16 %v602, %v598
        %v803 = vpack.c.b16 %v603, %v599
        %v804 = vpack.c.b16 %v604, %v600
        %v805 = vpack.c.b16 %v609, %v605
        %v806 = vpack.c.b16 %v610, %v606
        %v807 = vpack.c.b16 %v611, %v607
        %v808 = vpack.c.b16 %v612, %v608
        %v809 = vpack.c.b16 %v617, %v613
        %v810 = vpack.c.b16 %v618, %v614
        %v811 = vpack.c.b16 %v619, %v615
        %v812 = vpack.c.b16 %v620, %v616
        %v813 = vpack.c.b16 %v625, %v621
        %v814 = vpack.c.b16 %v626, %v622
        %v815 = vpack.c.b16 %v627, %v623
        %v816 = vpack.c.b16 %v628, %v624
        %v817 = vpack.c.b16 %v633, %v629
        %v818 = vpack.c.b16 %v634, %v630
        %v819 = vpack.c.b16 %v635, %v631
        %v820 = vpack.c.b16 %v636, %v632
        %v821 = vpack.c.b16 %v641, %v637
        %v822 = vpack.c.b16 %v642, %v638
        %v823 = vpack.c.b16 %v643, %v639
        %v824 = vpack.c.b16 %v644, %v640
        %v825 = vpack.c.b16 %v649, %v645
        %v826 = vpack.c.b16 %v650, %v646
        %v827 = vpack.c.b16 %v651, %v647
        %v828 = vpack.c.b16 %v652, %v648
        %v829 = vpack.c.b16 %v657, %v653
        %v830 = vpack.c.b16 %v658, %v654
        %v831 = vpack.c.b16 %v659, %v655
        %v832 = vpack.c.b16 %v660, %v656
        %v833 = vpack.c.b16 %v665, %v661
        %v834 = vpack.c.b16 %v666, %v662
        %v835 = vpack.c.b16 %v667, %v663
        %v836 = vpack.c.b16 %v668, %v664
        %v837 = vpack.c.b16 %v673, %v669
        %v838 = vpack.c.b16 %v674, %v670
        %v839 = vpack.c.b16 %v675, %v671
        %v840 = vpack.c.b16 %v676, %v672
        %v841 = vpack.c.b16 %v681, %v677
        %v842 = vpack.c.b16 %v682, %v678
        %v843 = vpack.c.b16 %v683, %v679
        %v844 = vpack.c.b16 %v684, %v680
        %v845 = vpack.c.b16 %v689, %v685
        %v846 = vpack.c.b16 %v690, %v686
        %v847 = vpack.c.b16 %v691, %v687
        %v848 = vpack.c.b16 %v692, %v688
        %v849 = vpack.c.b16 %v697, %v693
        %v850 = vpack.c.b16 %v698, %v694
        %v851 = vpack.c.b16 %v699, %v695
        %v852 = vpack.c.b16 %v700, %v696
        %v853 = vpack.c.b16 %v705, %v701
        %v854 = vpack.c.b16 %v706, %v702
        %v855 = vpack.c.b16 %v707, %v703
        %v856 = vpack.c.b16 %v708, %v704
        %v857 = vpack.c.b16 %v713, %v709
        %v858 = vpack.c.b16 %v714, %v710
        %v859 = vpack.c.b16 %v715, %v711
        %v860 = vpack.c.b16 %v716, %v712
        %v861 = vpack.c.b16 %v721, %v717
        %v862 = vpack.c.b16 %v722, %v718
        %v863 = vpack.c.b16 %v723, %v719
        %v864 = vpack.c.b16 %v724, %v720
        %v865 = vpack.c.b16 %v729, %v725
        %v866 = vpack.c.b16 %v730, %v726
        %v867 = vpack.c.b16 %v731, %v727
        %v868 = vpack.c.b16 %v732, %v728
        %v869 = vpack.c.b16 %v737, %v733
        %v870 = vpack.c.b16 %v738, %v734
        %v871 = vpack.c.b16 %v739, %v735
        %v872 = vpack.c.b16 %v740, %v736
        %v873 = vpack.c.b16 %v745, %v741
        %v874 = vpack.c.b16 %v746, %v742
        %v875 = vpack.c.b16 %v747, %v743
        %v876 = vpack.c.b16 %v748, %v744
        %v1006 = vlaneseq
        %v1007 = vshrl.u32 %v1006, 7
        %v1008 = vsub.s32 0, %v1007
        %v1009 = vrot.slane %v364, %v1008
        %v1010 = vlaneseq
        %v1011 = vshrl.u32 %v1010, 7
        %v1012 = vsub.s32 1, %v1011
        %v1013 = vrot.slane %v364, %v1012
        %v1014 = vlaneseq
        %v1015 = vshrl.u32 %v1014, 7
        %v1016 = vsub.s32 2, %v1015
        %v1017 = vrot.slane %v364, %v1016
        %v1018 = vlaneseq
        %v1019 = vshrl.u32 %v1018, 7
        %v1020 = vsub.s32 3, %v1019
        %v1021 = vrot.slane %v364, %v1020
        %1026 = vmatprep.subr.bf16.mxu0 %v750
        %1027 = vmatpush1.bf16.msra.mxu0 %v749
        %1028 = vmatprep.subr.bf16.mxu0 %v754
        %1029 = vmatpush1.bf16.msra.mxu0 %v753
        %1030 = vmatprep.subr.bf16.mxu0 %v758
        %1031 = vmatpush1.bf16.msra.mxu0 %v757
        %1032 = vmatprep.subr.bf16.mxu0 %v762
        %1033 = vmatpush1.bf16.msra.mxu0 %v761
        %1034 = vmatprep.subr.bf16.mxu0 %v766
        %1035 = vmatpush1.bf16.msra.mxu0 %v765
        %1036 = vmatprep.subr.bf16.mxu0 %v770
        %1037 = vmatpush1.bf16.msra.mxu0 %v769
        %1038 = vmatprep.subr.bf16.mxu0 %v774
        %1039 = vmatpush1.bf16.msra.mxu0 %v773
        %1040 = vmatprep.subr.bf16.mxu0 %v778
        %1041 = vmatpush1.bf16.msra.mxu0 %v777
        %1042 = vmatprep.subr.bf16.mxu0 %v782
        %1043 = vmatpush1.bf16.msra.mxu0 %v781
        %1044 = vmatprep.subr.bf16.mxu0 %v786
        %1045 = vmatpush1.bf16.msra.mxu0 %v785
        %1046 = vmatprep.subr.bf16.mxu0 %v790
        %1047 = vmatpush1.bf16.msra.mxu0 %v789
        %1048 = vmatprep.subr.bf16.mxu0 %v794
        %1049 = vmatpush1.bf16.msra.mxu0 %v793
        %1050 = vmatprep.subr.bf16.mxu0 %v798
        %1051 = vmatpush1.bf16.msra.mxu0 %v797
        %1052 = vmatprep.subr.bf16.mxu0 %v802
        %1053 = vmatpush1.bf16.msra.mxu0 %v801
        %1054 = vmatprep.subr.bf16.mxu0 %v806
        %1055 = vmatpush1.bf16.msra.mxu0 %v805
        %1056 = vmatprep.subr.bf16.mxu0 %v810
        %1057 = vmatpush1.bf16.msra.mxu0 %v809
        %1058 = vmatprep.mubr.bf16.mxu0 %v233
        %1059 = vmatmul.mubr.bf16.gmra.mrb[0].mxu0 %v232
        %v1060 = vpop.f32.mrb[0].mxu0
        %v1061 = vadd.f32 %v1009, %v1060
        %v1062 = vpop.f32.mrb[0].mxu0
        %v1063 = vadd.f32 %v1013, %v1062
        %v1064 = vpop.f32.mrb[0].mxu0
        %v1065 = vpop.f32.mrb[0].mxu0
        %1066 = vdwg.mxu0
        %1067 = vmatprep.subr.bf16.mxu0 %v814
        %1068 = vmatpush1.bf16.msra.mxu0 %v813
        %1069 = vmatprep.subr.bf16.mxu0 %v818
        %1070 = vmatpush1.bf16.msra.mxu0 %v817
        %1071 = vmatprep.subr.bf16.mxu0 %v822
        %1072 = vmatpush1.bf16.msra.mxu0 %v821
        %1073 = vmatprep.subr.bf16.mxu0 %v826
        %1074 = vmatpush1.bf16.msra.mxu0 %v825
        %1075 = vmatprep.subr.bf16.mxu0 %v830
        %1076 = vmatpush1.bf16.msra.mxu0 %v829
        %1077 = vmatprep.subr.bf16.mxu0 %v834
        %1078 = vmatpush1.bf16.msra.mxu0 %v833
        %1079 = vmatprep.subr.bf16.mxu0 %v838
        %1080 = vmatpush1.bf16.msra.mxu0 %v837
        %1081 = vmatprep.subr.bf16.mxu0 %v842
        %1082 = vmatpush1.bf16.msra.mxu0 %v841
        %1083 = vmatprep.subr.bf16.mxu0 %v846
        %1084 = vmatpush1.bf16.msra.mxu0 %v845
        %1085 = vmatprep.subr.bf16.mxu0 %v850
        %1086 = vmatpush1.bf16.msra.mxu0 %v849
        %1087 = vmatprep.subr.bf16.mxu0 %v854
        %1088 = vmatpush1.bf16.msra.mxu0 %v853
        %1089 = vmatprep.subr.bf16.mxu0 %v858
        %1090 = vmatpush1.bf16.msra.mxu0 %v857
        %1091 = vmatprep.subr.bf16.mxu0 %v862
        %1092 = vmatpush1.bf16.msra.mxu0 %v861
        %1093 = vmatprep.subr.bf16.mxu0 %v866
        %1094 = vmatpush1.bf16.msra.mxu0 %v865
        %1095 = vmatprep.subr.bf16.mxu0 %v870
        %1096 = vmatpush1.bf16.msra.mxu0 %v869
        %1097 = vmatprep.subr.bf16.mxu0 %v874
        %1098 = vmatpush1.bf16.msra.mxu0 %v873
        %1099 = vmatprep.mubr.bf16.mxu0 %v235
        %1100 = vmatmul.mubr.bf16.gmra.mrb[0].mxu0 %v234
        %v1101 = vpop.f32.mrb[0].mxu0
        %v1102 = vadd.f32 %v1061, %v1101
        %v1103 = vpop.f32.mrb[0].mxu0
        %v1104 = vadd.f32 %v1063, %v1103
        %v1105 = vpop.f32.mrb[0].mxu0
        %v1106 = vpop.f32.mrb[0].mxu0
        %1107 = vdwg.mxu0
        %1108 = vmatprep.subr.bf16.mxu0 %v752
        %1109 = vmatpush1.bf16.msra.mxu0 %v751
        %1110 = vmatprep.subr.bf16.mxu0 %v756
        %1111 = vmatpush1.bf16.msra.mxu0 %v755
        %1112 = vmatprep.subr.bf16.mxu0 %v760
        %1113 = vmatpush1.bf16.msra.mxu0 %v759
        %1114 = vmatprep.subr.bf16.mxu0 %v764
        %1115 = vmatpush1.bf16.msra.mxu0 %v763
        %1116 = vmatprep.subr.bf16.mxu0 %v768
        %1117 = vmatpush1.bf16.msra.mxu0 %v767
        %1118 = vmatprep.subr.bf16.mxu0 %v772
        %1119 = vmatpush1.bf16.msra.mxu0 %v771
        %1120 = vmatprep.subr.bf16.mxu0 %v776
        %1121 = vmatpush1.bf16.msra.mxu0 %v775
        %1122 = vmatprep.subr.bf16.mxu0 %v780
        %1123 = vmatpush1.bf16.msra.mxu0 %v779
        %1124 = vmatprep.subr.bf16.mxu0 %v784
        %1125 = vmatpush1.bf16.msra.mxu0 %v783
        %1126 = vmatprep.subr.bf16.mxu0 %v788
        %1127 = vmatpush1.bf16.msra.mxu0 %v787
        %1128 = vmatprep.subr.bf16.mxu0 %v792
        %1129 = vmatpush1.bf16.msra.mxu0 %v791
        %1130 = vmatprep.subr.bf16.mxu0 %v796
        %1131 = vmatpush1.bf16.msra.mxu0 %v795
        %1132 = vmatprep.subr.bf16.mxu0 %v800
        %1133 = vmatpush1.bf16.msra.mxu0 %v799
        %1134 = vmatprep.subr.bf16.mxu0 %v804
        %1135 = vmatpush1.bf16.msra.mxu0 %v803
        %1136 = vmatprep.subr.bf16.mxu0 %v808
        %1137 = vmatpush1.bf16.msra.mxu0 %v807
        %1138 = vmatprep.subr.bf16.mxu0 %v812
        %1139 = vmatpush1.bf16.msra.mxu0 %v811
        %1140 = vmatprep.mubr.bf16.mxu0 %v233
        %1141 = vmatmul.mubr.bf16.gmra.mrb[0].mxu0 %v232
        %v1142 = vpop.f32.mrb[0].mxu0
        %v1143 = vadd.f32 %v1017, %v1142
        %v1144 = vpop.f32.mrb[0].mxu0
        %v1145 = vadd.f32 %v1021, %v1144
        %v1146 = vpop.f32.mrb[0].mxu0
        %v1147 = vpop.f32.mrb[0].mxu0
        %1148 = vdwg.mxu0
        %1149 = vmatprep.subr.bf16.mxu0 %v816
        %1150 = vmatpush1.bf16.msra.mxu0 %v815
        %1151 = vmatprep.subr.bf16.mxu0 %v820
        %1152 = vmatpush1.bf16.msra.mxu0 %v819
        %1153 = vmatprep.subr.bf16.mxu0 %v824
        %1154 = vmatpush1.bf16.msra.mxu0 %v823
        %1155 = vmatprep.subr.bf16.mxu0 %v828
        %1156 = vmatpush1.bf16.msra.mxu0 %v827
        %1157 = vmatprep.subr.bf16.mxu0 %v832
        %1158 = vmatpush1.bf16.msra.mxu0 %v831
        %1159 = vmatprep.subr.bf16.mxu0 %v836
        %1160 = vmatpush1.bf16.msra.mxu0 %v835
        %1161 = vmatprep.subr.bf16.mxu0 %v840
        %1162 = vmatpush1.bf16.msra.mxu0 %v839
        %1163 = vmatprep.subr.bf16.mxu0 %v844
        %1164 = vmatpush1.bf16.msra.mxu0 %v843
        %1165 = vmatprep.subr.bf16.mxu0 %v848
        %1166 = vmatpush1.bf16.msra.mxu0 %v847
        %1167 = vmatprep.subr.bf16.mxu0 %v852
        %1168 = vmatpush1.bf16.msra.mxu0 %v851
        %1169 = vmatprep.subr.bf16.mxu0 %v856
        %1170 = vmatpush1.bf16.msra.mxu0 %v855
        %1171 = vmatprep.subr.bf16.mxu0 %v860
        %1172 = vmatpush1.bf16.msra.mxu0 %v859
        %1173 = vmatprep.subr.bf16.mxu0 %v864
        %1174 = vmatpush1.bf16.msra.mxu0 %v863
        %1175 = vmatprep.subr.bf16.mxu0 %v868
        %1176 = vmatpush1.bf16.msra.mxu0 %v867
        %1177 = vmatprep.subr.bf16.mxu0 %v872
        %1178 = vmatpush1.bf16.msra.mxu0 %v871
        %1179 = vmatprep.subr.bf16.mxu0 %v876
        %1180 = vmatpush1.bf16.msra.mxu0 %v875
        %1181 = vmatprep.mubr.bf16.mxu0 %v235
        %1182 = vmatmul.mubr.bf16.gmra.mrb[0].mxu0 %v234
        %v1183 = vpop.f32.mrb[0].mxu0
        %v1184 = vadd.f32 %v1143, %v1183
        %v1185 = vpop.f32.mrb[0].mxu0
        %v1186 = vadd.f32 %v1145, %v1185
        %v1187 = vpop.f32.mrb[0].mxu0
        %v1188 = vpop.f32.mrb[0].mxu0
        %1189 = vdwg.mxu0
        %v1194 = vcombine.low %v1102, %v1104
        %v1195 = vcombine.low %v1184, %v1186
        %v1197 = vunpack.c.l.s4 1966171168
        %v1198 = vunpack.c.0.s8 %v1197
        %v1199 = vlaneseq
        %v1200 = vshrl.u32 %v1199, 7
        %v1201 = vsub.s32 %v1198, %v1200
        %v1202 = vrot.slane %v1194, %v1201
        %v1204 = vunpack.c.l.s4 1966171168
        %v1205 = vunpack.c.0.s8 %v1204
        %v1206 = vlaneseq
        %v1207 = vshrl.u32 %v1206, 7
        %v1208 = vsub.s32 %v1205, %v1207
        %v1209 = vrot.slane %v1195, %v1208
        %v1210 = vcombine.low %v1202, %v1209
        %v1212 = vunpack.c.l.s4 1966171168
        %v1213 = vunpack.c.0.s8 %v1212
        %v1214 = vlaneseq
        %v1215 = vshrl.u32 %v1214, 7
        %v1216 = vsub.s32 %v1213, %v1215
        %v1217 = vrot.slane %v1210, %v1216
        %v1219 = vlaneseq
        %vm1220 = vcmp.ge.s32.totalorder %v1219, 0
        %vm1221 = vcmp.lt.s32.totalorder %v1219, 512
        %vm1222 = vmand %vm1220, %vm1221
        %1223 = vst.msk [vmem:[%s208] sm:$0xf] %vm1222, %v1217
        %s1224 = smul.u32 4, %s17
        %p1225 = scmp.lt.s32.totalorder %s1224, 7
        %s1226 = scalar_select %p1225, %s1224, 7
        %s1227 = scalar_lea.vmem %s3, %s1226
        // Predicated region
        $region37: #{cbow_forward.2} parent=31 // pred_check
          %p1228 = pneg %p108
        $region38: #{cbow_forward.2} parent=31 // pred_check_branch
          %1230 = sbr.rel (%p1228) target = $region40
        $region39: #{cbow_forward.2} parent=31 // pred_region
          %s1231 = smul.u32 4, %s17
        $region40: #{cbow_forward.2} parent=31 // pred_fallthru
          _
      $region32: #{cbow_forward.2} parent=5 // pred_fallthru
        _
      %p1232 = scmp.le.s32.totalorder 2, %s12
      // Predicated region
      $region41: #{cbow_forward.2} parent=5 // pred_check
        %p1233 = pneg %p1232
      $region42: #{cbow_forward.2} parent=5 // pred_check_branch
        %1235 = sbr.rel (%p1233) target = $region44
      $region43: #{cbow_forward.2} parent=5 // pred_region
        %s1236 = ssub.s32 %s12, 2
        // Predicated region
        $region45: #{cbow_forward.2} parent=43 // pred_check
          %p1237 = pneg %p114
        $region46: #{cbow_forward.2} parent=43 // pred_check_branch
          %1239 = sbr.rel (%p1237) target = $region48
        $region47: #{cbow_forward.2} parent=43 // pred_region
          %s1240 = smul.u32 4, %s18
          %p1241 = scmp.lt.s32.totalorder %s1240, 7
          %s1242 = scalar_select %p1241, %s1240, 7
          %s1243 = scalar_lea.vmem %s3, %s1242
        $region48: #{cbow_forward.2} parent=43 // pred_fallthru
          _
      $region44: #{cbow_forward.2} parent=5 // pred_fallthru
        _
    $region6: #{cbow_forward.2} parent=1 // loop_footer
      %s16 = sadd.s32 1, %s12
    $region7: #{cbow_forward.2} parent=1 // loop_footer_branch
      %11 = sbr.rel target = $region3
    $region8: #{cbow_forward.2} parent=1 // loop_exit
      _
    %1244 = vsyncpa [#allocation3], 1
    %s1245 = scalar_lea.sflag [#allocation3], 1
    %1246 = vsyncpa %s1245, 1

</llo_original>
